<compile_context>
chip_gen: v7x
topology: tpu7x:2x2x1
jax: 0.10.0
libtpu: 0.0.40
codegen_flags: <defaults>
</compile_context>

<pallas_src>
import jax
import jax.numpy as jnp
import numpy as np
from jax.experimental import pallas as pl
from jax.experimental.pallas import tpu as pltpu


def _round_up(x, m):
    return ((x + m - 1) // m) * m


def _make_router_kernel(th, W, Wc):
    """Kernel for one (batch, coarse-row-tile) grid step.

    Shapes seen by the kernel:
      hf_ref:   (C, FW)    fine features, spatially flat (FW = 2*th*W fine pixels)
      hc_ref:   (C, SW)    coarse features, spatially flat (SW = th*Wc)
      wf_ref:   (2, C)     gate weights for the pooled-fine half (1/4 pre-folded)
      wc_ref:   (2, C)     gate weights for the coarse half
      pcol_ref: (W, Wc)    0/1 column-pair pooling matrix (pcol[w, c] = [w//2 == c])
      b_ref:    (2, 1)     gate bias
      out_ref:  (2, SW)    gate logits, lane-dense (coarse spatial on lanes)
      gf_ref:   (2, FW)    scratch: fine-resolution gate
      rs_ref:   (2*th, W)  scratch: row-pair-pooled fine gate (one coarse row per row)
    """

    def kernel(hf_ref, hc_ref, wf_ref, wc_ref, pcol_ref, b_ref,
               out_ref, gf_ref, rs_ref):
        # ---- coarse half + bias: (2, C) @ (C, SW) -> (2, SW) ----
        out_ref[...] = (
            jnp.dot(wc_ref[...], hc_ref[...], preferred_element_type=jnp.float32)
            + b_ref[...]
        ).astype(out_ref.dtype)

        # ---- fine half at fine resolution: (2, C) @ (C, FW) -> (2, FW) ----
        # (2x2 average pool commutes with the linear gate; 1/4 folded into wf.)
        gf_ref[...] = jnp.dot(
            wf_ref[...], hf_ref[...], preferred_element_type=jnp.float32)

        # ---- 2x2 pool of the small fine gate ----
        # Row pairs: contiguous lane slices; restructure flat (2, FW) into
        # (2*th, W) with fine rows 2r and 2r+1 summed per coarse row r.
        for o in range(2):
            for r in range(th):
                base = 2 * r * W
                rs_ref[o * th + r:o * th + r + 1, :] = (
                    gf_ref[o:o + 1, pl.ds(base, W)]
                    + gf_ref[o:o + 1, pl.ds(base + W, W)])

        # Column pairs for all rows at once: one small (2*th, W) @ (W, Wc)
        # matmul against a constant 0/1 matrix (RHS latched once on the MXU).
        res = jnp.dot(rs_ref[...], pcol_ref[...],
                      preferred_element_type=jnp.float32)          # (2*th, Wc)

        # Scatter the pooled fine gate into the lane-dense (2, SW) output block.
        for o in range(2):
            for r in range(th):
                sl = pl.ds(r * Wc, Wc)
                out_ref[o:o + 1, sl] = (
                    out_ref[o:o + 1, sl]
                    + res[o * th + r:o * th + r + 1, :].astype(out_ref.dtype))

    return kernel


def _vmem_capacity_bytes():
    """Physical VMEM of the current generation (conservative fallback)."""
    cap = 64 * 1024 * 1024          # v7x per-TensorCore VMEM (smallest case)
    try:
        info = pltpu.get_tpu_info()
        cap = int(getattr(info, "vmem_capacity_bytes", cap)) or cap
    except Exception:
        pass
    return cap


def _tile_footprint_bytes(th, C, W, Wc, act_itemsize):
    """Estimated resident VMEM for one tile choice (double-buffered blocks)."""
    SW = th * Wc
    FW = 2 * th * W
    c_pad = _round_up(C, 8)
    sw_pad = _round_up(SW, 128)
    fw_pad = _round_up(FW, 128)
    w_pad = _round_up(W, 128)
    wc_pad = _round_up(Wc, 128)
    b = 0
    b += 2 * c_pad * fw_pad * act_itemsize        # h_fine block (x2 buffers)
    b += 2 * c_pad * sw_pad * act_itemsize        # h_coarse block (x2 buffers)
    b += 2 * 8 * sw_pad * 4                       # out block (f32, sublane-padded)
    b += 2 * w_pad * wc_pad * 4                   # column-pool matrix (constant)
    b += 8 * fw_pad * 4                           # gf scratch (sublane-padded)
    b += _round_up(2 * th, 8) * w_pad * 4         # rs scratch
    b += 4 * 8 * _round_up(C, 128) * 4            # weight blocks (tiny)
    b += 2 * 8 * 128 * 4                          # bias block (tiny)
    return b


def _choose_tile_rows(N, Hc, Wc, W, C, act_itemsize, budget_bytes, max_rows=128):
    """Largest lane-legal divisor of Hc fitting the VMEM budget (prefer >=2 steps)."""
    divisors = [t for t in range(1, Hc + 1) if Hc % t == 0]
    legal = [t for t in divisors if t == Hc or (t * Wc) % 128 == 0]
    if not legal:
        legal = [Hc]
    fitting = [t for t in legal
               if _tile_footprint_bytes(t, C, W, Wc, act_itemsize) <= budget_bytes]
    candidates = fitting if fitting else legal
    capped = [t for t in candidates if t <= max_rows]    # bound in-kernel unroll
    pool = capped if capped else candidates
    th = max(pool) if fitting else min(pool)
    # v7x has 2 TensorCores sharing the grid: keep >= 2 grid steps when possible.
    if N * (Hc // th) < 2:
        smaller = [t for t in pool if t < th and N * (Hc // t) >= 2]
        if smaller:
            th = max(smaller)
    return th


def dual_grain_feature_router(h_fine, h_coarse, weight, bias):
    """h_fine: (N,C,H,W), h_coarse: (N,C,H/2,W/2), weight: (2, 2C), bias: (2,).

    Returns the routing gate of shape (N, H/2, W/2, 2), matching the PyTorch module.
    """
    N, C, H, W = h_fine.shape
    assert H % 2 == 0 and W % 2 == 0, "AvgPool2d(2,2) path assumes even H, W"
    Hc, Wc = H // 2, W // 2
    assert h_coarse.shape == (N, C, Hc, Wc)
    assert weight.shape == (2, 2 * C) and bias.shape == (2,)
    S = Hc * Wc

    # Match weight dtype to the activations (no in-kernel upcast of the big
    # tiles when activations are bf16); accumulate in f32 regardless.
    def _wdtype(x):
        return x.dtype if jnp.issubdtype(x.dtype, jnp.floating) else jnp.float32

    w_coarse = weight[:, :C].astype(_wdtype(h_coarse))                    # (2, C)
    w_fine = (weight[:, C:].astype(jnp.float32) * 0.25).astype(_wdtype(h_fine))
    bias2 = bias.astype(jnp.float32).reshape(2, 1)                        # (2, 1)

    # Constant 0/1 column-pair pooling matrix: pcol[w, c] = 1 iff w // 2 == c.
    pcol = (jnp.arange(W, dtype=jnp.int32)[:, None] // 2
            == jnp.arange(Wc, dtype=jnp.int32)[None, :]).astype(jnp.float32)

    # ---- generation-aware tiling (128 MiB VMEM on v5e/v6e, 64 MiB on v7x) ----
    act_itemsize = max(h_fine.dtype.itemsize, h_coarse.dtype.itemsize)
    vmem_cap = _vmem_capacity_bytes()
    budget = int(vmem_cap * 0.6)
    th = _choose_tile_rows(N, Hc, Wc, W, C, act_itemsize, budget)
    SW = th * Wc               # coarse pixels per tile
    FW = 2 * th * W            # fine pixels per tile (= 4 * SW)
    n_tiles = Hc // th
    footprint = _tile_footprint_bytes(th, C, W, Wc, act_itemsize)
    vmem_limit = int(min(vmem_cap - 2 * 1024 * 1024,
                         footprint + 16 * 1024 * 1024))
    vmem_limit = max(vmem_limit, 16 * 1024 * 1024)

    # ---- glue: pure reshapes only (no HBM transposes of the activations) ----
    hf_flat = h_fine.reshape(N, C, H * W)
    hc_flat = h_coarse.reshape(N, C, S)

    flops = int(N * (4 * C * H * W + 4 * C * S + 4 * Hc * W * Wc + 8 * S))
    bytes_accessed = int(N * (C * H * W + C * S) * act_itemsize
                         + N * 2 * S * 4 + W * Wc * 4 + 4 * C * 4 + 8)

    out = pl.pallas_call(
        _make_router_kernel(th, W, Wc),
        out_shape=jax.ShapeDtypeStruct((N, 2, S), jnp.float32),
        grid=(N, n_tiles),
        in_specs=[
            pl.BlockSpec((None, C, FW), lambda n, i: (n, 0, i)),   # h_fine (flat)
            pl.BlockSpec((None, C, SW), lambda n, i: (n, 0, i)),   # h_coarse (flat)
            pl.BlockSpec((2, C), lambda n, i: (0, 0)),             # w_fine (x 0.25)
            pl.BlockSpec((2, C), lambda n, i: (0, 0)),             # w_coarse
            pl.BlockSpec((W, Wc), lambda n, i: (0, 0)),            # column-pool matrix
            pl.BlockSpec((2, 1), lambda n, i: (0, 0)),             # bias
        ],
        out_specs=pl.BlockSpec((None, 2, SW), lambda n, i: (n, 0, i)),
        scratch_shapes=[
            pltpu.VMEM((2, FW), jnp.float32),        # fine-resolution gate
            pltpu.VMEM((2 * th, W), jnp.float32),    # row-pair-pooled fine gate
        ],
        compiler_params=pltpu.CompilerParams(
            dimension_semantics=("parallel", "parallel"),
            vmem_limit_bytes=vmem_limit),
        cost_estimate=pl.CostEstimate(
            flops=flops, transcendentals=0, bytes_accessed=bytes_accessed),
    )(hf_flat, hc_flat, w_fine, w_coarse, pcol, bias2)

    # Tiny epilogue: (N, 2, S) -> (N, Hc, Wc, 2). Kept outside the kernel so the
    # kernel's stores stay lane-dense.
    return out.reshape(N, 2, Hc, Wc).transpose(0, 2, 3, 1)


def _reference(h_fine, h_coarse, weight, bias):
    """Pure-JAX reference mirroring the PyTorch forward."""
    N, C, H, W = h_fine.shape
    Hc, Wc = H // 2, W // 2
    avg = h_fine.reshape(N, C, Hc, 2, Wc, 2).mean(axis=(3, 5))           # AvgPool2d(2,2)
    x = jnp.concatenate([h_coarse, avg], axis=1).transpose(0, 2, 3, 1)   # (N,Hc,Wc,2C)
    return x @ weight.T + bias                                           # (N,Hc,Wc,2)


if __name__ == "__main__":
    key = jax.random.PRNGKey(0)
    k1, k2, k3, k4 = jax.random.split(key, 4)

    N, C, H, W = 2, 4, 16, 16
    h_fine = jax.random.normal(k1, (N, C, H, W), dtype=jnp.float32)
    h_coarse = jax.random.normal(k2, (N, C, H // 2, W // 2), dtype=jnp.float32)

    # deterministic Linear(2C, 2) init (PyTorch-style uniform bound)
    fan_in = 2 * C
    bound = 1.0 / np.sqrt(fan_in)
    weight = jax.random.uniform(k3, (2, 2 * C), jnp.float32, -bound, bound)
    bias = jax.random.uniform(k4, (2,), jnp.float32, -bound, bound)

    gate = dual_grain_feature_router(h_fine, h_coarse, weight, bias)
    gate = jax.block_until_ready(gate)

    ref = _reference(h_fine, h_coarse, weight, bias)
    assert gate.shape == (N, H // 2, W // 2, 2)
    np.testing.assert_allclose(np.asarray(gate), np.asarray(ref), rtol=1e-5, atol=1e-5)

    print("KERNEL_OK")
</pallas_src>

<mosaic_0001>
module attributes {stable_mosaic.version = 11 : i64} {
  func.func @kernel(%arg0: i32, %arg1: i32, %arg2: memref<1x4x256xf32, #tpu.memory_space<vmem>>, %arg3: memref<1x4x64xf32, #tpu.memory_space<vmem>>, %arg4: memref<2x4xf32, #tpu.memory_space<vmem>>, %arg5: memref<2x4xf32, #tpu.memory_space<vmem>>, %arg6: memref<16x8xf32, #tpu.memory_space<vmem>>, %arg7: memref<2x1xf32, #tpu.memory_space<vmem>>, %arg8: memref<1x2x64xf32, #tpu.memory_space<vmem>>, %arg9: memref<2x256xf32, #tpu.memory_space<vmem>>, %arg10: memref<16x16xf32, #tpu.memory_space<vmem>>) attributes {dimension_semantics = [#tpu.dimension_semantics<parallel>, #tpu.dimension_semantics<parallel>], iteration_bounds = array<i64: 2, 1>, scalar_prefetch = 0 : i64, scratch_operands = 2 : i64, tpu.core_type = #tpu.core_type<tc>, window_params = [{transform_indices = @transform_0, window_bounds = array<i64: 1, 4, 256>}, {transform_indices = @transform_1, window_bounds = array<i64: 1, 4, 64>}, {pipeline_mode = #tpu.pipeline_mode<synchronous>, transform_indices = @transform_2, window_bounds = array<i64: 2, 4>}, {pipeline_mode = #tpu.pipeline_mode<synchronous>, transform_indices = @transform_3, window_bounds = array<i64: 2, 4>}, {pipeline_mode = #tpu.pipeline_mode<synchronous>, transform_indices = @transform_4, window_bounds = array<i64: 16, 8>}, {pipeline_mode = #tpu.pipeline_mode<synchronous>, transform_indices = @transform_5, window_bounds = array<i64: 2, 1>}, {transform_indices = @transform_6, window_bounds = array<i64: 1, 2, 64>}]} {
    %c0 = arith.constant 0 : index
    %c0_0 = arith.constant 0 : index
    %0 = vector.load %arg5[%c0, %c0_0] : memref<2x4xf32, #tpu.memory_space<vmem>>, vector<2x4xf32>
    %c0_1 = arith.constant 0 : index
    %c0_2 = arith.constant 0 : index
    %c0_3 = arith.constant 0 : index
    %1 = vector.load %arg3[%c0_1, %c0_2, %c0_3] : memref<1x4x64xf32, #tpu.memory_space<vmem>>, vector<1x4x64xf32>
    %2 = vector.shape_cast %1 : vector<1x4x64xf32> to vector<4x64xf32>
    %cst = arith.constant dense<0.000000e+00> : vector<2x64xf32>
    %3 = tpu.matmul %0, %2, %cst {dimension_numbers = #tpu.dot_dimension_numbers<[1], [0], [0], [1], [0, 0, 1, 1], [], []>} : vector<2x4xf32>, vector<4x64xf32>, vector<2x64xf32> -> vector<2x64xf32>
    %c0_4 = arith.constant 0 : index
    %c0_5 = arith.constant 0 : index
    %4 = vector.load %arg7[%c0_4, %c0_5] : memref<2x1xf32, #tpu.memory_space<vmem>>, vector<2x1xf32>
    %5 = vector.broadcast %4 : vector<2x1xf32> to vector<2x64xf32>
    %6 = arith.addf %3, %5 : vector<2x64xf32>
    %c0_6 = arith.constant 0 : index
    %c0_7 = arith.constant 0 : index
    %c0_8 = arith.constant 0 : index
    %7 = vector.load %arg8[%c0_6, %c0_7, %c0_8] : memref<1x2x64xf32, #tpu.memory_space<vmem>>, vector<1x2x64xf32>
    %8 = vector.shape_cast %7 : vector<1x2x64xf32> to vector<2x64xf32>
    %9 = vector.shape_cast %6 : vector<2x64xf32> to vector<1x2x64xf32>
    tpu.vector_store %arg8[%c0_6, %c0_7, %c0_8], %9 {strides = array<i32>} : memref<1x2x64xf32, #tpu.memory_space<vmem>>, vector<1x2x64xf32>,
    %c0_9 = arith.constant 0 : index
    %c0_10 = arith.constant 0 : index
    %10 = vector.load %arg4[%c0_9, %c0_10] : memref<2x4xf32, #tpu.memory_space<vmem>>, vector<2x4xf32>
    %c0_11 = arith.constant 0 : index
    %c0_12 = arith.constant 0 : index
    %c0_13 = arith.constant 0 : index
    %11 = vector.load %arg2[%c0_11, %c0_12, %c0_13] : memref<1x4x256xf32, #tpu.memory_space<vmem>>, vector<1x4x256xf32>
    %12 = vector.shape_cast %11 : vector<1x4x256xf32> to vector<4x256xf32>
    %cst_14 = arith.constant dense<0.000000e+00> : vector<2x256xf32>
    %13 = tpu.matmul %10, %12, %cst_14 {dimension_numbers = #tpu.dot_dimension_numbers<[1], [0], [0], [1], [0, 0, 1, 1], [], []>} : vector<2x4xf32>, vector<4x256xf32>, vector<2x256xf32> -> vector<2x256xf32>
    %c0_15 = arith.constant 0 : index
    %c0_16 = arith.constant 0 : index
    %14 = vector.load %arg9[%c0_15, %c0_16] : memref<2x256xf32, #tpu.memory_space<vmem>>, vector<2x256xf32>
    tpu.vector_store %arg9[%c0_15, %c0_16], %13 {strides = array<i32>} : memref<2x256xf32, #tpu.memory_space<vmem>>, vector<2x256xf32>,
    %c0_17 = arith.constant 0 : index
    %c0_18 = arith.constant 0 : index
    %15 = vector.load %arg9[%c0_17, %c0_18] : memref<2x256xf32, #tpu.memory_space<vmem>>, vector<1x16xf32>
    %c0_19 = arith.constant 0 : index
    %c16 = arith.constant 16 : index
    %16 = vector.load %arg9[%c0_19, %c16] : memref<2x256xf32, #tpu.memory_space<vmem>>, vector<1x16xf32>
    %17 = arith.addf %15, %16 : vector<1x16xf32>
    %c0_20 = arith.constant 0 : index
    %c0_21 = arith.constant 0 : index
    %18 = vector.load %arg10[%c0_20, %c0_21] : memref<16x16xf32, #tpu.memory_space<vmem>>, vector<1x16xf32>
    tpu.vector_store %arg10[%c0_20, %c0_21], %17 {strides = array<i32>} : memref<16x16xf32, #tpu.memory_space<vmem>>, vector<1x16xf32>,
    %c0_22 = arith.constant 0 : index
    %c32 = arith.constant 32 : index
    %19 = vector.load %arg9[%c0_22, %c32] : memref<2x256xf32, #tpu.memory_space<vmem>>, vector<1x16xf32>
    %c0_23 = arith.constant 0 : index
    %c48 = arith.constant 48 : index
    %20 = vector.load %arg9[%c0_23, %c48] : memref<2x256xf32, #tpu.memory_space<vmem>>, vector<1x16xf32>
    %21 = arith.addf %19, %20 : vector<1x16xf32>
    %c1 = arith.constant 1 : index
    %c0_24 = arith.constant 0 : index
    %22 = vector.load %arg10[%c1, %c0_24] : memref<16x16xf32, #tpu.memory_space<vmem>>, vector<1x16xf32>
    tpu.vector_store %arg10[%c1, %c0_24], %21 {strides = array<i32>} : memref<16x16xf32, #tpu.memory_space<vmem>>, vector<1x16xf32>,
    %c0_25 = arith.constant 0 : index
    %c64 = arith.constant 64 : index
    %23 = vector.load %arg9[%c0_25, %c64] : memref<2x256xf32, #tpu.memory_space<vmem>>, vector<1x16xf32>
    %c0_26 = arith.constant 0 : index
    %c80 = arith.constant 80 : index
    %24 = vector.load %arg9[%c0_26, %c80] : memref<2x256xf32, #tpu.memory_space<vmem>>, vector<1x16xf32>
    %25 = arith.addf %23, %24 : vector<1x16xf32>
    %c2 = arith.constant 2 : index
    %c0_27 = arith.constant 0 : index
    %26 = vector.load %arg10[%c2, %c0_27] : memref<16x16xf32, #tpu.memory_space<vmem>>, vector<1x16xf32>
    tpu.vector_store %arg10[%c2, %c0_27], %25 {strides = array<i32>} : memref<16x16xf32, #tpu.memory_space<vmem>>, vector<1x16xf32>,
    %c0_28 = arith.constant 0 : index
    %c96 = arith.constant 96 : index
    %27 = vector.load %arg9[%c0_28, %c96] : memref<2x256xf32, #tpu.memory_space<vmem>>, vector<1x16xf32>
    %c0_29 = arith.constant 0 : index
    %c112 = arith.constant 112 : index
    %28 = vector.load %arg9[%c0_29, %c112] : memref<2x256xf32, #tpu.memory_space<vmem>>, vector<1x16xf32>
    %29 = arith.addf %27, %28 : vector<1x16xf32>
    %c3 = arith.constant 3 : index
    %c0_30 = arith.constant 0 : index
    %30 = vector.load %arg10[%c3, %c0_30] : memref<16x16xf32, #tpu.memory_space<vmem>>, vector<1x16xf32>
    tpu.vector_store %arg10[%c3, %c0_30], %29 {strides = array<i32>} : memref<16x16xf32, #tpu.memory_space<vmem>>, vector<1x16xf32>,
    %c0_31 = arith.constant 0 : index
    %c128 = arith.constant 128 : index
    %31 = vector.load %arg9[%c0_31, %c128] : memref<2x256xf32, #tpu.memory_space<vmem>>, vector<1x16xf32>
    %c0_32 = arith.constant 0 : index
    %c144 = arith.constant 144 : index
    %32 = vector.load %arg9[%c0_32, %c144] : memref<2x256xf32, #tpu.memory_space<vmem>>, vector<1x16xf32>
    %33 = arith.addf %31, %32 : vector<1x16xf32>
    %c4 = arith.constant 4 : index
    %c0_33 = arith.constant 0 : index
    %34 = vector.load %arg10[%c4, %c0_33] : memref<16x16xf32, #tpu.memory_space<vmem>>, vector<1x16xf32>
    tpu.vector_store %arg10[%c4, %c0_33], %33 {strides = array<i32>} : memref<16x16xf32, #tpu.memory_space<vmem>>, vector<1x16xf32>,
    %c0_34 = arith.constant 0 : index
    %c160 = arith.constant 160 : index
    %35 = vector.load %arg9[%c0_34, %c160] : memref<2x256xf32, #tpu.memory_space<vmem>>, vector<1x16xf32>
    %c0_35 = arith.constant 0 : index
    %c176 = arith.constant 176 : index
    %36 = vector.load %arg9[%c0_35, %c176] : memref<2x256xf32, #tpu.memory_space<vmem>>, vector<1x16xf32>
    %37 = arith.addf %35, %36 : vector<1x16xf32>
    %c5 = arith.constant 5 : index
    %c0_36 = arith.constant 0 : index
    %38 = vector.load %arg10[%c5, %c0_36] : memref<16x16xf32, #tpu.memory_space<vmem>>, vector<1x16xf32>
    tpu.vector_store %arg10[%c5, %c0_36], %37 {strides = array<i32>} : memref<16x16xf32, #tpu.memory_space<vmem>>, vector<1x16xf32>,
    %c0_37 = arith.constant 0 : index
    %c192 = arith.constant 192 : index
    %39 = vector.load %arg9[%c0_37, %c192] : memref<2x256xf32, #tpu.memory_space<vmem>>, vector<1x16xf32>
    %c0_38 = arith.constant 0 : index
    %c208 = arith.constant 208 : index
    %40 = vector.load %arg9[%c0_38, %c208] : memref<2x256xf32, #tpu.memory_space<vmem>>, vector<1x16xf32>
    %41 = arith.addf %39, %40 : vector<1x16xf32>
    %c6 = arith.constant 6 : index
    %c0_39 = arith.constant 0 : index
    %42 = vector.load %arg10[%c6, %c0_39] : memref<16x16xf32, #tpu.memory_space<vmem>>, vector<1x16xf32>
    tpu.vector_store %arg10[%c6, %c0_39], %41 {strides = array<i32>} : memref<16x16xf32, #tpu.memory_space<vmem>>, vector<1x16xf32>,
    %c0_40 = arith.constant 0 : index
    %c224 = arith.constant 224 : index
    %43 = vector.load %arg9[%c0_40, %c224] : memref<2x256xf32, #tpu.memory_space<vmem>>, vector<1x16xf32>
    %c0_41 = arith.constant 0 : index
    %c240 = arith.constant 240 : index
    %44 = vector.load %arg9[%c0_41, %c240] : memref<2x256xf32, #tpu.memory_space<vmem>>, vector<1x16xf32>
    %45 = arith.addf %43, %44 : vector<1x16xf32>
    %c7 = arith.constant 7 : index
    %c0_42 = arith.constant 0 : index
    %46 = vector.load %arg10[%c7, %c0_42] : memref<16x16xf32, #tpu.memory_space<vmem>>, vector<1x16xf32>
    tpu.vector_store %arg10[%c7, %c0_42], %45 {strides = array<i32>} : memref<16x16xf32, #tpu.memory_space<vmem>>, vector<1x16xf32>,
    %c1_43 = arith.constant 1 : index
    %c0_44 = arith.constant 0 : index
    %47 = vector.load %arg9[%c1_43, %c0_44] : memref<2x256xf32, #tpu.memory_space<vmem>>, vector<1x16xf32>
    %c1_45 = arith.constant 1 : index
    %c16_46 = arith.constant 16 : index
    %48 = vector.load %arg9[%c1_45, %c16_46] : memref<2x256xf32, #tpu.memory_space<vmem>>, vector<1x16xf32>
    %49 = arith.addf %47, %48 : vector<1x16xf32>
    %c8 = arith.constant 8 : index
    %c0_47 = arith.constant 0 : index
    %50 = vector.load %arg10[%c8, %c0_47] : memref<16x16xf32, #tpu.memory_space<vmem>>, vector<1x16xf32>
    tpu.vector_store %arg10[%c8, %c0_47], %49 {strides = array<i32>} : memref<16x16xf32, #tpu.memory_space<vmem>>, vector<1x16xf32>,
    %c1_48 = arith.constant 1 : index
    %c32_49 = arith.constant 32 : index
    %51 = vector.load %arg9[%c1_48, %c32_49] : memref<2x256xf32, #tpu.memory_space<vmem>>, vector<1x16xf32>
    %c1_50 = arith.constant 1 : index
    %c48_51 = arith.constant 48 : index
    %52 = vector.load %arg9[%c1_50, %c48_51] : memref<2x256xf32, #tpu.memory_space<vmem>>, vector<1x16xf32>
    %53 = arith.addf %51, %52 : vector<1x16xf32>
    %c9 = arith.constant 9 : index
    %c0_52 = arith.constant 0 : index
    %54 = vector.load %arg10[%c9, %c0_52] : memref<16x16xf32, #tpu.memory_space<vmem>>, vector<1x16xf32>
    tpu.vector_store %arg10[%c9, %c0_52], %53 {strides = array<i32>} : memref<16x16xf32, #tpu.memory_space<vmem>>, vector<1x16xf32>,
    %c1_53 = arith.constant 1 : index
    %c64_54 = arith.constant 64 : index
    %55 = vector.load %arg9[%c1_53, %c64_54] : memref<2x256xf32, #tpu.memory_space<vmem>>, vector<1x16xf32>
    %c1_55 = arith.constant 1 : index
    %c80_56 = arith.constant 80 : index
    %56 = vector.load %arg9[%c1_55, %c80_56] : memref<2x256xf32, #tpu.memory_space<vmem>>, vector<1x16xf32>
    %57 = arith.addf %55, %56 : vector<1x16xf32>
    %c10 = arith.constant 10 : index
    %c0_57 = arith.constant 0 : index
    %58 = vector.load %arg10[%c10, %c0_57] : memref<16x16xf32, #tpu.memory_space<vmem>>, vector<1x16xf32>
    tpu.vector_store %arg10[%c10, %c0_57], %57 {strides = array<i32>} : memref<16x16xf32, #tpu.memory_space<vmem>>, vector<1x16xf32>,
    %c1_58 = arith.constant 1 : index
    %c96_59 = arith.constant 96 : index
    %59 = vector.load %arg9[%c1_58, %c96_59] : memref<2x256xf32, #tpu.memory_space<vmem>>, vector<1x16xf32>
    %c1_60 = arith.constant 1 : index
    %c112_61 = arith.constant 112 : index
    %60 = vector.load %arg9[%c1_60, %c112_61] : memref<2x256xf32, #tpu.memory_space<vmem>>, vector<1x16xf32>
    %61 = arith.addf %59, %60 : vector<1x16xf32>
    %c11 = arith.constant 11 : index
    %c0_62 = arith.constant 0 : index
    %62 = vector.load %arg10[%c11, %c0_62] : memref<16x16xf32, #tpu.memory_space<vmem>>, vector<1x16xf32>
    tpu.vector_store %arg10[%c11, %c0_62], %61 {strides = array<i32>} : memref<16x16xf32, #tpu.memory_space<vmem>>, vector<1x16xf32>,
    %c1_63 = arith.constant 1 : index
    %c128_64 = arith.constant 128 : index
    %63 = vector.load %arg9[%c1_63, %c128_64] : memref<2x256xf32, #tpu.memory_space<vmem>>, vector<1x16xf32>
    %c1_65 = arith.constant 1 : index
    %c144_66 = arith.constant 144 : index
    %64 = vector.load %arg9[%c1_65, %c144_66] : memref<2x256xf32, #tpu.memory_space<vmem>>, vector<1x16xf32>
    %65 = arith.addf %63, %64 : vector<1x16xf32>
    %c12 = arith.constant 12 : index
    %c0_67 = arith.constant 0 : index
    %66 = vector.load %arg10[%c12, %c0_67] : memref<16x16xf32, #tpu.memory_space<vmem>>, vector<1x16xf32>
    tpu.vector_store %arg10[%c12, %c0_67], %65 {strides = array<i32>} : memref<16x16xf32, #tpu.memory_space<vmem>>, vector<1x16xf32>,
    %c1_68 = arith.constant 1 : index
    %c160_69 = arith.constant 160 : index
    %67 = vector.load %arg9[%c1_68, %c160_69] : memref<2x256xf32, #tpu.memory_space<vmem>>, vector<1x16xf32>
    %c1_70 = arith.constant 1 : index
    %c176_71 = arith.constant 176 : index
    %68 = vector.load %arg9[%c1_70, %c176_71] : memref<2x256xf32, #tpu.memory_space<vmem>>, vector<1x16xf32>
    %69 = arith.addf %67, %68 : vector<1x16xf32>
    %c13 = arith.constant 13 : index
    %c0_72 = arith.constant 0 : index
    %70 = vector.load %arg10[%c13, %c0_72] : memref<16x16xf32, #tpu.memory_space<vmem>>, vector<1x16xf32>
    tpu.vector_store %arg10[%c13, %c0_72], %69 {strides = array<i32>} : memref<16x16xf32, #tpu.memory_space<vmem>>, vector<1x16xf32>,
    %c1_73 = arith.constant 1 : index
    %c192_74 = arith.constant 192 : index
    %71 = vector.load %arg9[%c1_73, %c192_74] : memref<2x256xf32, #tpu.memory_space<vmem>>, vector<1x16xf32>
    %c1_75 = arith.constant 1 : index
    %c208_76 = arith.constant 208 : index
    %72 = vector.load %arg9[%c1_75, %c208_76] : memref<2x256xf32, #tpu.memory_space<vmem>>, vector<1x16xf32>
    %73 = arith.addf %71, %72 : vector<1x16xf32>
    %c14 = arith.constant 14 : index
    %c0_77 = arith.constant 0 : index
    %74 = vector.load %arg10[%c14, %c0_77] : memref<16x16xf32, #tpu.memory_space<vmem>>, vector<1x16xf32>
    tpu.vector_store %arg10[%c14, %c0_77], %73 {strides = array<i32>} : memref<16x16xf32, #tpu.memory_space<vmem>>, vector<1x16xf32>,
    %c1_78 = arith.constant 1 : index
    %c224_79 = arith.constant 224 : index
    %75 = vector.load %arg9[%c1_78, %c224_79] : memref<2x256xf32, #tpu.memory_space<vmem>>, vector<1x16xf32>
    %c1_80 = arith.constant 1 : index
    %c240_81 = arith.constant 240 : index
    %76 = vector.load %arg9[%c1_80, %c240_81] : memref<2x256xf32, #tpu.memory_space<vmem>>, vector<1x16xf32>
    %77 = arith.addf %75, %76 : vector<1x16xf32>
    %c15 = arith.constant 15 : index
    %c0_82 = arith.constant 0 : index
    %78 = vector.load %arg10[%c15, %c0_82] : memref<16x16xf32, #tpu.memory_space<vmem>>, vector<1x16xf32>
    tpu.vector_store %arg10[%c15, %c0_82], %77 {strides = array<i32>} : memref<16x16xf32, #tpu.memory_space<vmem>>, vector<1x16xf32>,
    %c0_83 = arith.constant 0 : index
    %c0_84 = arith.constant 0 : index
    %79 = vector.load %arg10[%c0_83, %c0_84] : memref<16x16xf32, #tpu.memory_space<vmem>>, vector<16x16xf32>
    %c0_85 = arith.constant 0 : index
    %c0_86 = arith.constant 0 : index
    %80 = vector.load %arg6[%c0_85, %c0_86] : memref<16x8xf32, #tpu.memory_space<vmem>>, vector<16x8xf32>
    %cst_87 = arith.constant dense<0.000000e+00> : vector<16x8xf32>
    %81 = tpu.matmul %79, %80, %cst_87 {dimension_numbers = #tpu.dot_dimension_numbers<[1], [0], [0], [1], [0, 0, 1, 1], [], []>} : vector<16x16xf32>, vector<16x8xf32>, vector<16x8xf32> -> vector<16x8xf32>
    %c0_88 = arith.constant 0 : index
    %c0_89 = arith.constant 0 : index
    %c0_90 = arith.constant 0 : index
    %82 = vector.load %arg8[%c0_88, %c0_89, %c0_90] : memref<1x2x64xf32, #tpu.memory_space<vmem>>, vector<1x1x8xf32>
    %83 = vector.shape_cast %82 : vector<1x1x8xf32> to vector<1x8xf32>
    %84 = vector.extract_strided_slice %81 {offsets = [0, 0], sizes = [1, 8], strides = [1, 1]} : vector<16x8xf32> to vector<1x8xf32>
    %85 = arith.addf %83, %84 : vector<1x8xf32>
    %c0_91 = arith.constant 0 : index
    %c0_92 = arith.constant 0 : index
    %c0_93 = arith.constant 0 : index
    %86 = vector.load %arg8[%c0_91, %c0_92, %c0_93] : memref<1x2x64xf32, #tpu.memory_space<vmem>>, vector<1x1x8xf32>
    %87 = vector.shape_cast %86 : vector<1x1x8xf32> to vector<1x8xf32>
    %88 = vector.shape_cast %85 : vector<1x8xf32> to vector<1x1x8xf32>
    tpu.vector_store %arg8[%c0_91, %c0_92, %c0_93], %88 {strides = array<i32>} : memref<1x2x64xf32, #tpu.memory_space<vmem>>, vector<1x1x8xf32>,
    %c0_94 = arith.constant 0 : index
    %c0_95 = arith.constant 0 : index
    %c8_96 = arith.constant 8 : index
    %89 = vector.load %arg8[%c0_94, %c0_95, %c8_96] : memref<1x2x64xf32, #tpu.memory_space<vmem>>, vector<1x1x8xf32>
    %90 = vector.shape_cast %89 : vector<1x1x8xf32> to vector<1x8xf32>
    %91 = vector.extract_strided_slice %81 {offsets = [1, 0], sizes = [1, 8], strides = [1, 1]} : vector<16x8xf32> to vector<1x8xf32>
    %92 = arith.addf %90, %91 : vector<1x8xf32>
    %c0_97 = arith.constant 0 : index
    %c0_98 = arith.constant 0 : index
    %c8_99 = arith.constant 8 : index
    %93 = vector.load %arg8[%c0_97, %c0_98, %c8_99] : memref<1x2x64xf32, #tpu.memory_space<vmem>>, vector<1x1x8xf32>
    %94 = vector.shape_cast %93 : vector<1x1x8xf32> to vector<1x8xf32>
    %95 = vector.shape_cast %92 : vector<1x8xf32> to vector<1x1x8xf32>
    tpu.vector_store %arg8[%c0_97, %c0_98, %c8_99], %95 {strides = array<i32>} : memref<1x2x64xf32, #tpu.memory_space<vmem>>, vector<1x1x8xf32>,
    %c0_100 = arith.constant 0 : index
    %c0_101 = arith.constant 0 : index
    %c16_102 = arith.constant 16 : index
    %96 = vector.load %arg8[%c0_100, %c0_101, %c16_102] : memref<1x2x64xf32, #tpu.memory_space<vmem>>, vector<1x1x8xf32>
    %97 = vector.shape_cast %96 : vector<1x1x8xf32> to vector<1x8xf32>
    %98 = vector.extract_strided_slice %81 {offsets = [2, 0], sizes = [1, 8], strides = [1, 1]} : vector<16x8xf32> to vector<1x8xf32>
    %99 = arith.addf %97, %98 : vector<1x8xf32>
    %c0_103 = arith.constant 0 : index
    %c0_104 = arith.constant 0 : index
    %c16_105 = arith.constant 16 : index
    %100 = vector.load %arg8[%c0_103, %c0_104, %c16_105] : memref<1x2x64xf32, #tpu.memory_space<vmem>>, vector<1x1x8xf32>
    %101 = vector.shape_cast %100 : vector<1x1x8xf32> to vector<1x8xf32>
    %102 = vector.shape_cast %99 : vector<1x8xf32> to vector<1x1x8xf32>
    tpu.vector_store %arg8[%c0_103, %c0_104, %c16_105], %102 {strides = array<i32>} : memref<1x2x64xf32, #tpu.memory_space<vmem>>, vector<1x1x8xf32>,
    %c0_106 = arith.constant 0 : index
    %c0_107 = arith.constant 0 : index
    %c24 = arith.constant 24 : index
    %103 = vector.load %arg8[%c0_106, %c0_107, %c24] : memref<1x2x64xf32, #tpu.memory_space<vmem>>, vector<1x1x8xf32>
    %104 = vector.shape_cast %103 : vector<1x1x8xf32> to vector<1x8xf32>
    %105 = vector.extract_strided_slice %81 {offsets = [3, 0], sizes = [1, 8], strides = [1, 1]} : vector<16x8xf32> to vector<1x8xf32>
    %106 = arith.addf %104, %105 : vector<1x8xf32>
    %c0_108 = arith.constant 0 : index
    %c0_109 = arith.constant 0 : index
    %c24_110 = arith.constant 24 : index
    %107 = vector.load %arg8[%c0_108, %c0_109, %c24_110] : memref<1x2x64xf32, #tpu.memory_space<vmem>>, vector<1x1x8xf32>
    %108 = vector.shape_cast %107 : vector<1x1x8xf32> to vector<1x8xf32>
    %109 = vector.shape_cast %106 : vector<1x8xf32> to vector<1x1x8xf32>
    tpu.vector_store %arg8[%c0_108, %c0_109, %c24_110], %109 {strides = array<i32>} : memref<1x2x64xf32, #tpu.memory_space<vmem>>, vector<1x1x8xf32>,
    %c0_111 = arith.constant 0 : index
    %c0_112 = arith.constant 0 : index
    %c32_113 = arith.constant 32 : index
    %110 = vector.load %arg8[%c0_111, %c0_112, %c32_113] : memref<1x2x64xf32, #tpu.memory_space<vmem>>, vector<1x1x8xf32>
    %111 = vector.shape_cast %110 : vector<1x1x8xf32> to vector<1x8xf32>
    %112 = vector.extract_strided_slice %81 {offsets = [4, 0], sizes = [1, 8], strides = [1, 1]} : vector<16x8xf32> to vector<1x8xf32>
    %113 = arith.addf %111, %112 : vector<1x8xf32>
    %c0_114 = arith.constant 0 : index
    %c0_115 = arith.constant 0 : index
    %c32_116 = arith.constant 32 : index
    %114 = vector.load %arg8[%c0_114, %c0_115, %c32_116] : memref<1x2x64xf32, #tpu.memory_space<vmem>>, vector<1x1x8xf32>
    %115 = vector.shape_cast %114 : vector<1x1x8xf32> to vector<1x8xf32>
    %116 = vector.shape_cast %113 : vector<1x8xf32> to vector<1x1x8xf32>
    tpu.vector_store %arg8[%c0_114, %c0_115, %c32_116], %116 {strides = array<i32>} : memref<1x2x64xf32, #tpu.memory_space<vmem>>, vector<1x1x8xf32>,
    %c0_117 = arith.constant 0 : index
    %c0_118 = arith.constant 0 : index
    %c40 = arith.constant 40 : index
    %117 = vector.load %arg8[%c0_117, %c0_118, %c40] : memref<1x2x64xf32, #tpu.memory_space<vmem>>, vector<1x1x8xf32>
    %118 = vector.shape_cast %117 : vector<1x1x8xf32> to vector<1x8xf32>
    %119 = vector.extract_strided_slice %81 {offsets = [5, 0], sizes = [1, 8], strides = [1, 1]} : vector<16x8xf32> to vector<1x8xf32>
    %120 = arith.addf %118, %119 : vector<1x8xf32>
    %c0_119 = arith.constant 0 : index
    %c0_120 = arith.constant 0 : index
    %c40_121 = arith.constant 40 : index
    %121 = vector.load %arg8[%c0_119, %c0_120, %c40_121] : memref<1x2x64xf32, #tpu.memory_space<vmem>>, vector<1x1x8xf32>
    %122 = vector.shape_cast %121 : vector<1x1x8xf32> to vector<1x8xf32>
    %123 = vector.shape_cast %120 : vector<1x8xf32> to vector<1x1x8xf32>
    tpu.vector_store %arg8[%c0_119, %c0_120, %c40_121], %123 {strides = array<i32>} : memref<1x2x64xf32, #tpu.memory_space<vmem>>, vector<1x1x8xf32>,
    %c0_122 = arith.constant 0 : index
    %c0_123 = arith.constant 0 : index
    %c48_124 = arith.constant 48 : index
    %124 = vector.load %arg8[%c0_122, %c0_123, %c48_124] : memref<1x2x64xf32, #tpu.memory_space<vmem>>, vector<1x1x8xf32>
    %125 = vector.shape_cast %124 : vector<1x1x8xf32> to vector<1x8xf32>
    %126 = vector.extract_strided_slice %81 {offsets = [6, 0], sizes = [1, 8], strides = [1, 1]} : vector<16x8xf32> to vector<1x8xf32>
    %127 = arith.addf %125, %126 : vector<1x8xf32>
    %c0_125 = arith.constant 0 : index
    %c0_126 = arith.constant 0 : index
    %c48_127 = arith.constant 48 : index
    %128 = vector.load %arg8[%c0_125, %c0_126, %c48_127] : memref<1x2x64xf32, #tpu.memory_space<vmem>>, vector<1x1x8xf32>
    %129 = vector.shape_cast %128 : vector<1x1x8xf32> to vector<1x8xf32>
    %130 = vector.shape_cast %127 : vector<1x8xf32> to vector<1x1x8xf32>
    tpu.vector_store %arg8[%c0_125, %c0_126, %c48_127], %130 {strides = array<i32>} : memref<1x2x64xf32, #tpu.memory_space<vmem>>, vector<1x1x8xf32>,
    %c0_128 = arith.constant 0 : index
    %c0_129 = arith.constant 0 : index
    %c56 = arith.constant 56 : index
    %131 = vector.load %arg8[%c0_128, %c0_129, %c56] : memref<1x2x64xf32, #tpu.memory_space<vmem>>, vector<1x1x8xf32>
    %132 = vector.shape_cast %131 : vector<1x1x8xf32> to vector<1x8xf32>
    %133 = vector.extract_strided_slice %81 {offsets = [7, 0], sizes = [1, 8], strides = [1, 1]} : vector<16x8xf32> to vector<1x8xf32>
    %134 = arith.addf %132, %133 : vector<1x8xf32>
    %c0_130 = arith.constant 0 : index
    %c0_131 = arith.constant 0 : index
    %c56_132 = arith.constant 56 : index
    %135 = vector.load %arg8[%c0_130, %c0_131, %c56_132] : memref<1x2x64xf32, #tpu.memory_space<vmem>>, vector<1x1x8xf32>
    %136 = vector.shape_cast %135 : vector<1x1x8xf32> to vector<1x8xf32>
    %137 = vector.shape_cast %134 : vector<1x8xf32> to vector<1x1x8xf32>
    tpu.vector_store %arg8[%c0_130, %c0_131, %c56_132], %137 {strides = array<i32>} : memref<1x2x64xf32, #tpu.memory_space<vmem>>, vector<1x1x8xf32>,
    %c0_133 = arith.constant 0 : index
    %c1_134 = arith.constant 1 : index
    %c0_135 = arith.constant 0 : index
    %138 = vector.load %arg8[%c0_133, %c1_134, %c0_135] : memref<1x2x64xf32, #tpu.memory_space<vmem>>, vector<1x1x8xf32>
    %139 = vector.shape_cast %138 : vector<1x1x8xf32> to vector<1x8xf32>
    %140 = vector.extract_strided_slice %81 {offsets = [8, 0], sizes = [1, 8], strides = [1, 1]} : vector<16x8xf32> to vector<1x8xf32>
    %141 = arith.addf %139, %140 : vector<1x8xf32>
    %c0_136 = arith.constant 0 : index
    %c1_137 = arith.constant 1 : index
    %c0_138 = arith.constant 0 : index
    %142 = vector.load %arg8[%c0_136, %c1_137, %c0_138] : memref<1x2x64xf32, #tpu.memory_space<vmem>>, vector<1x1x8xf32>
    %143 = vector.shape_cast %142 : vector<1x1x8xf32> to vector<1x8xf32>
    %144 = vector.shape_cast %141 : vector<1x8xf32> to vector<1x1x8xf32>
    tpu.vector_store %arg8[%c0_136, %c1_137, %c0_138], %144 {strides = array<i32>} : memref<1x2x64xf32, #tpu.memory_space<vmem>>, vector<1x1x8xf32>,
    %c0_139 = arith.constant 0 : index
    %c1_140 = arith.constant 1 : index
    %c8_141 = arith.constant 8 : index
    %145 = vector.load %arg8[%c0_139, %c1_140, %c8_141] : memref<1x2x64xf32, #tpu.memory_space<vmem>>, vector<1x1x8xf32>
    %146 = vector.shape_cast %145 : vector<1x1x8xf32> to vector<1x8xf32>
    %147 = vector.extract_strided_slice %81 {offsets = [9, 0], sizes = [1, 8], strides = [1, 1]} : vector<16x8xf32> to vector<1x8xf32>
    %148 = arith.addf %146, %147 : vector<1x8xf32>
    %c0_142 = arith.constant 0 : index
    %c1_143 = arith.constant 1 : index
    %c8_144 = arith.constant 8 : index
    %149 = vector.load %arg8[%c0_142, %c1_143, %c8_144] : memref<1x2x64xf32, #tpu.memory_space<vmem>>, vector<1x1x8xf32>
    %150 = vector.shape_cast %149 : vector<1x1x8xf32> to vector<1x8xf32>
    %151 = vector.shape_cast %148 : vector<1x8xf32> to vector<1x1x8xf32>
    tpu.vector_store %arg8[%c0_142, %c1_143, %c8_144], %151 {strides = array<i32>} : memref<1x2x64xf32, #tpu.memory_space<vmem>>, vector<1x1x8xf32>,
    %c0_145 = arith.constant 0 : index
    %c1_146 = arith.constant 1 : index
    %c16_147 = arith.constant 16 : index
    %152 = vector.load %arg8[%c0_145, %c1_146, %c16_147] : memref<1x2x64xf32, #tpu.memory_space<vmem>>, vector<1x1x8xf32>
    %153 = vector.shape_cast %152 : vector<1x1x8xf32> to vector<1x8xf32>
    %154 = vector.extract_strided_slice %81 {offsets = [10, 0], sizes = [1, 8], strides = [1, 1]} : vector<16x8xf32> to vector<1x8xf32>
    %155 = arith.addf %153, %154 : vector<1x8xf32>
    %c0_148 = arith.constant 0 : index
    %c1_149 = arith.constant 1 : index
    %c16_150 = arith.constant 16 : index
    %156 = vector.load %arg8[%c0_148, %c1_149, %c16_150] : memref<1x2x64xf32, #tpu.memory_space<vmem>>, vector<1x1x8xf32>
    %157 = vector.shape_cast %156 : vector<1x1x8xf32> to vector<1x8xf32>
    %158 = vector.shape_cast %155 : vector<1x8xf32> to vector<1x1x8xf32>
    tpu.vector_store %arg8[%c0_148, %c1_149, %c16_150], %158 {strides = array<i32>} : memref<1x2x64xf32, #tpu.memory_space<vmem>>, vector<1x1x8xf32>,
    %c0_151 = arith.constant 0 : index
    %c1_152 = arith.constant 1 : index
    %c24_153 = arith.constant 24 : index
    %159 = vector.load %arg8[%c0_151, %c1_152, %c24_153] : memref<1x2x64xf32, #tpu.memory_space<vmem>>, vector<1x1x8xf32>
    %160 = vector.shape_cast %159 : vector<1x1x8xf32> to vector<1x8xf32>
    %161 = vector.extract_strided_slice %81 {offsets = [11, 0], sizes = [1, 8], strides = [1, 1]} : vector<16x8xf32> to vector<1x8xf32>
    %162 = arith.addf %160, %161 : vector<1x8xf32>
    %c0_154 = arith.constant 0 : index
    %c1_155 = arith.constant 1 : index
    %c24_156 = arith.constant 24 : index
    %163 = vector.load %arg8[%c0_154, %c1_155, %c24_156] : memref<1x2x64xf32, #tpu.memory_space<vmem>>, vector<1x1x8xf32>
    %164 = vector.shape_cast %163 : vector<1x1x8xf32> to vector<1x8xf32>
    %165 = vector.shape_cast %162 : vector<1x8xf32> to vector<1x1x8xf32>
    tpu.vector_store %arg8[%c0_154, %c1_155, %c24_156], %165 {strides = array<i32>} : memref<1x2x64xf32, #tpu.memory_space<vmem>>, vector<1x1x8xf32>,
    %c0_157 = arith.constant 0 : index
    %c1_158 = arith.constant 1 : index
    %c32_159 = arith.constant 32 : index
    %166 = vector.load %arg8[%c0_157, %c1_158, %c32_159] : memref<1x2x64xf32, #tpu.memory_space<vmem>>, vector<1x1x8xf32>
    %167 = vector.shape_cast %166 : vector<1x1x8xf32> to vector<1x8xf32>
    %168 = vector.extract_strided_slice %81 {offsets = [12, 0], sizes = [1, 8], strides = [1, 1]} : vector<16x8xf32> to vector<1x8xf32>
    %169 = arith.addf %167, %168 : vector<1x8xf32>
    %c0_160 = arith.constant 0 : index
    %c1_161 = arith.constant 1 : index
    %c32_162 = arith.constant 32 : index
    %170 = vector.load %arg8[%c0_160, %c1_161, %c32_162] : memref<1x2x64xf32, #tpu.memory_space<vmem>>, vector<1x1x8xf32>
    %171 = vector.shape_cast %170 : vector<1x1x8xf32> to vector<1x8xf32>
    %172 = vector.shape_cast %169 : vector<1x8xf32> to vector<1x1x8xf32>
    tpu.vector_store %arg8[%c0_160, %c1_161, %c32_162], %172 {strides = array<i32>} : memref<1x2x64xf32, #tpu.memory_space<vmem>>, vector<1x1x8xf32>,
    %c0_163 = arith.constant 0 : index
    %c1_164 = arith.constant 1 : index
    %c40_165 = arith.constant 40 : index
    %173 = vector.load %arg8[%c0_163, %c1_164, %c40_165] : memref<1x2x64xf32, #tpu.memory_space<vmem>>, vector<1x1x8xf32>
    %174 = vector.shape_cast %173 : vector<1x1x8xf32> to vector<1x8xf32>
    %175 = vector.extract_strided_slice %81 {offsets = [13, 0], sizes = [1, 8], strides = [1, 1]} : vector<16x8xf32> to vector<1x8xf32>
    %176 = arith.addf %174, %175 : vector<1x8xf32>
    %c0_166 = arith.constant 0 : index
    %c1_167 = arith.constant 1 : index
    %c40_168 = arith.constant 40 : index
    %177 = vector.load %arg8[%c0_166, %c1_167, %c40_168] : memref<1x2x64xf32, #tpu.memory_space<vmem>>, vector<1x1x8xf32>
    %178 = vector.shape_cast %177 : vector<1x1x8xf32> to vector<1x8xf32>
    %179 = vector.shape_cast %176 : vector<1x8xf32> to vector<1x1x8xf32>
    tpu.vector_store %arg8[%c0_166, %c1_167, %c40_168], %179 {strides = array<i32>} : memref<1x2x64xf32, #tpu.memory_space<vmem>>, vector<1x1x8xf32>,
    %c0_169 = arith.constant 0 : index
    %c1_170 = arith.constant 1 : index
    %c48_171 = arith.constant 48 : index
    %180 = vector.load %arg8[%c0_169, %c1_170, %c48_171] : memref<1x2x64xf32, #tpu.memory_space<vmem>>, vector<1x1x8xf32>
    %181 = vector.shape_cast %180 : vector<1x1x8xf32> to vector<1x8xf32>
    %182 = vector.extract_strided_slice %81 {offsets = [14, 0], sizes = [1, 8], strides = [1, 1]} : vector<16x8xf32> to vector<1x8xf32>
    %183 = arith.addf %181, %182 : vector<1x8xf32>
    %c0_172 = arith.constant 0 : index
    %c1_173 = arith.constant 1 : index
    %c48_174 = arith.constant 48 : index
    %184 = vector.load %arg8[%c0_172, %c1_173, %c48_174] : memref<1x2x64xf32, #tpu.memory_space<vmem>>, vector<1x1x8xf32>
    %185 = vector.shape_cast %184 : vector<1x1x8xf32> to vector<1x8xf32>
    %186 = vector.shape_cast %183 : vector<1x8xf32> to vector<1x1x8xf32>
    tpu.vector_store %arg8[%c0_172, %c1_173, %c48_174], %186 {strides = array<i32>} : memref<1x2x64xf32, #tpu.memory_space<vmem>>, vector<1x1x8xf32>,
    %c0_175 = arith.constant 0 : index
    %c1_176 = arith.constant 1 : index
    %c56_177 = arith.constant 56 : index
    %187 = vector.load %arg8[%c0_175, %c1_176, %c56_177] : memref<1x2x64xf32, #tpu.memory_space<vmem>>, vector<1x1x8xf32>
    %188 = vector.shape_cast %187 : vector<1x1x8xf32> to vector<1x8xf32>
    %189 = vector.extract_strided_slice %81 {offsets = [15, 0], sizes = [1, 8], strides = [1, 1]} : vector<16x8xf32> to vector<1x8xf32>
    %190 = arith.addf %188, %189 : vector<1x8xf32>
    %c0_178 = arith.constant 0 : index
    %c1_179 = arith.constant 1 : index
    %c56_180 = arith.constant 56 : index
    %191 = vector.load %arg8[%c0_178, %c1_179, %c56_180] : memref<1x2x64xf32, #tpu.memory_space<vmem>>, vector<1x1x8xf32>
    %192 = vector.shape_cast %191 : vector<1x1x8xf32> to vector<1x8xf32>
    %193 = vector.shape_cast %190 : vector<1x8xf32> to vector<1x1x8xf32>
    tpu.vector_store %arg8[%c0_178, %c1_179, %c56_180], %193 {strides = array<i32>} : memref<1x2x64xf32, #tpu.memory_space<vmem>>, vector<1x1x8xf32>,
    return
  }
  func.func @transform_0(%arg0: i32, %arg1: i32) -> (i32, i32, i32) {
    %c0_i32 = arith.constant 0 : i32
    %c0_i32_0 = arith.constant 0 : i32
    return %arg0, %c0_i32, %arg1 : i32, i32, i32
  }
  func.func @transform_1(%arg0: i32, %arg1: i32) -> (i32, i32, i32) {
    %c0_i32 = arith.constant 0 : i32
    %c0_i32_0 = arith.constant 0 : i32
    return %arg0, %c0_i32, %arg1 : i32, i32, i32
  }
  func.func @transform_2(%arg0: i32, %arg1: i32) -> (i32, i32) {
    %c0_i32 = arith.constant 0 : i32
    %c0_i32_0 = arith.constant 0 : i32
    %c0_i32_1 = arith.constant 0 : i32
    return %c0_i32, %c0_i32_0 : i32, i32
  }
  func.func @transform_3(%arg0: i32, %arg1: i32) -> (i32, i32) {
    %c0_i32 = arith.constant 0 : i32
    %c0_i32_0 = arith.constant 0 : i32
    %c0_i32_1 = arith.constant 0 : i32
    return %c0_i32, %c0_i32_0 : i32, i32
  }
  func.func @transform_4(%arg0: i32, %arg1: i32) -> (i32, i32) {
    %c0_i32 = arith.constant 0 : i32
    %c0_i32_0 = arith.constant 0 : i32
    %c0_i32_1 = arith.constant 0 : i32
    return %c0_i32, %c0_i32_0 : i32, i32
  }
  func.func @transform_5(%arg0: i32, %arg1: i32) -> (i32, i32) {
    %c0_i32 = arith.constant 0 : i32
    %c0_i32_0 = arith.constant 0 : i32
    %c0_i32_1 = arith.constant 0 : i32
    return %c0_i32, %c0_i32_0 : i32, i32
  }
  func.func @transform_6(%arg0: i32, %arg1: i32) -> (i32, i32, i32) {
    %c0_i32 = arith.constant 0 : i32
    %c0_i32_0 = arith.constant 0 : i32
    return %arg0, %c0_i32, %arg1 : i32, i32, i32
  }
}

</mosaic_0001>

<llo_original>
// kernel: tpu_custom_call.1
$region0: #{tpu_custom_call.1}
  #allocation0 [shape = 'u32[]', space=smem, size = 0x4, offset = 0x4, fixed_abs, tag = 'smem constant byte address 0x4 - core index']
  #allocation1 [shape = 'u32[144,128]{1,0:T(1,128)}', space=vmem, size = 0x12000, scoped, tag = 'internal scratch']
  #allocation2 [shape = 'f32[2,256]{1,0:T(2,128)}', space=vmem, size = 0x800, scoped, tag = 'scratch operand']
  #allocation3 [shape = 'f32[16,16]{1,0:T(8,128)}', space=vmem, size = 0x2000, scoped, tag = 'scratch operand']
  %s0 = inlined_call_operand.vmem [shape: f32[2,4,256], index: 0, kind: input, shape index: {}]
  %s1 = inlined_call_operand.vmem [shape: f32[2,4,64], index: 1, kind: input, shape index: {}]
  %s2 = inlined_call_operand.vmem [shape: f32[2,4], index: 2, kind: input, shape index: {}]
  %s3 = inlined_call_operand.vmem [shape: f32[2,4], index: 3, kind: input, shape index: {}]
  %s4 = inlined_call_operand.vmem [shape: f32[16,8], index: 4, kind: input, shape index: {}]
  %s5 = inlined_call_operand.vmem [shape: f32[2,1], index: 5, kind: input, shape index: {}]
  %s6 = inlined_call_operand.hbm [shape: f32[2,2,64], index: 6, kind: output, shape index: {}]
  %s7 = sld [smem:[#allocation0]]
  $region57: #{tpu_custom_call.1} parent=0
    _
  %s9 = ssub.s32 1, %s7
  %s10 = scalar_select 0, %s9, %s7
  $region1: #{tpu_custom_call.1} parent=0
    #allocation4 [shape = 'u8[2048]{0}', space=vmem, size = 0x800, scoped, tag = 'output window, operand 0']
    #allocation5 [shape = 's32[2]{0}', space=sflag, size = 0x8, scoped, tag = 'scoped memory for tpu_custom_call.1']
    %11 = vsyncpa [#allocation5], 0
    %s12 = scalar_lea.sflag [#allocation5], 1
    %13 = vsyncpa %s12, 0
    loop: start=0, step=1, limit=4
    $region2: #{tpu_custom_call.1} parent=1 // loop_pre_header
      _
    $region3: #{tpu_custom_call.1} parent=1 // loop_header
      %s15 = sphi 0, %s19
      %p16 = scmp.ge.s32.totalorder %s15, 4
      %s22 = sphi 0, %s34
      %s23 = sphi 0, %s30
      %s24 = sphi 0, %s22
      %s25 = sphi 0, %s23
      %s26 = sphi 0, %s24
      %s27 = sphi 0, %s25
      %s39 = sphi 0, %s41
      %s42 = sphi 0, %s39
      %s43 = sphi 0, %s42
      %s59 = sphi 0, %s43
      %s67 = sphi 0, %s69
      %s70 = sphi 0, %s67
      %s71 = sphi 0, %s70
      %s87 = sphi 0, %s71
      %s91 = sphi 0, %s91
      %s93 = sphi 0, %s91
      %s94 = sphi 0, %s93
      %s108 = sphi 0, %s94
      %s112 = sphi 0, %s112
      %s114 = sphi 0, %s112
      %s115 = sphi 0, %s114
      %s129 = sphi 0, %s115
      %s133 = sphi 0, %s133
      %s135 = sphi 0, %s133
      %s136 = sphi 0, %s135
      %s150 = sphi 0, %s136
      %s154 = sphi 0, %s154
      %s156 = sphi 0, %s154
      %s157 = sphi 0, %s156
      %s171 = sphi 0, %s157
      %s179 = sphi 0, %s181
      %s182 = sphi 0, %s179
      %s183 = sphi 0, %s182
      %s199 = sphi 0, %s183
    $region4: #{tpu_custom_call.1} parent=1 // loop_header_branch
      %18 = sbr.rel (%p16) target = $region8
    $region5: #{tpu_custom_call.1} parent=1 // loop_body
      %s20 = ssub.s32 %s15, 1
      %s21 = ssub.s32 %s15, 2
      %s28 = sadd.s32 1, %s23
      %p29 = scmp.ge.s32.totalorder %s28, 1
      %s30 = scalar_select %p29, 0, %s28
      %s31 = sadd.s32 1, %s22
      %s32 = scalar_select %p29, %s31, %s22
      %p33 = scmp.ge.s32.totalorder %s32, 2
      %s34 = scalar_select %p33, 0, %s32
      %s35 = ssub.s32 %s22, %s34
      %s36 = ssub.s32 %s23, %s30
      %s37 = sor.u32 %s35, %s36
      %p38 = scmp.eq.s32.totalorder %s37, 0
      %s40 = sadd.s32 %s39, 1
      %s41 = scalar_select %p38, %s39, %s40
      %p44 = pneg %p38
      %p45 = scmp.eq.s32.totalorder %s15, 1
      %p46 = por %p44, %p45
      %p47 = scmp.ne.s32.totalorder %s39, %s42
      %p48 = scmp.eq.s32.totalorder %s15, 0
      %p49 = por %p47, %p48
      %p50 = scmp.ne.s32.totalorder %s39, %s42
      %p51 = scmp.eq.s32.totalorder %s20, 1
      %p52 = por %p50, %p51
      %p53 = scmp.ne.s32.totalorder %s42, %s43
      %p54 = scmp.eq.s32.totalorder %s20, 0
      %p55 = por %p53, %p54
      %p56 = scmp.ne.s32.totalorder %s42, %s43
      %p57 = scmp.eq.s32.totalorder %s21, 1
      %p58 = por %p56, %p57
      %p60 = scmp.ne.s32.totalorder %s43, %s59
      %p61 = scmp.eq.s32.totalorder %s21, 0
      %p62 = por %p60, %p61
      %s63 = ssub.s32 %s22, %s34
      %s64 = ssub.s32 %s23, %s30
      %s65 = sor.u32 %s63, %s64
      %p66 = scmp.eq.s32.totalorder %s65, 0
      %s68 = sadd.s32 %s67, 1
      %s69 = scalar_select %p66, %s67, %s68
      %p72 = pneg %p66
      %p73 = scmp.eq.s32.totalorder %s15, 1
      %p74 = por %p72, %p73
      %p75 = scmp.ne.s32.totalorder %s67, %s70
      %p76 = scmp.eq.s32.totalorder %s15, 0
      %p77 = por %p75, %p76
      %p78 = scmp.ne.s32.totalorder %s67, %s70
      %p79 = scmp.eq.s32.totalorder %s20, 1
      %p80 = por %p78, %p79
      %p81 = scmp.ne.s32.totalorder %s70, %s71
      %p82 = scmp.eq.s32.totalorder %s20, 0
      %p83 = por %p81, %p82
      %p84 = scmp.ne.s32.totalorder %s70, %s71
      %p85 = scmp.eq.s32.totalorder %s21, 1
      %p86 = por %p84, %p85
      %p88 = scmp.ne.s32.totalorder %s71, %s87
      %p89 = scmp.eq.s32.totalorder %s21, 0
      %p90 = por %p88, %p89
      %s92 = sadd.s32 %s91, 1
      %p95 = scmp.eq.s32.totalorder %s15, 1
      %p96 = scmp.ne.s32.totalorder %s91, %s93
      %p97 = scmp.eq.s32.totalorder %s15, 0
      %p98 = por %p96, %p97
      %p99 = scmp.ne.s32.totalorder %s91, %s93
      %p100 = scmp.eq.s32.totalorder %s20, 1
      %p101 = por %p99, %p100
      %p102 = scmp.ne.s32.totalorder %s93, %s94
      %p103 = scmp.eq.s32.totalorder %s20, 0
      %p104 = por %p102, %p103
      %p105 = scmp.ne.s32.totalorder %s93, %s94
      %p106 = scmp.eq.s32.totalorder %s21, 1
      %p107 = por %p105, %p106
      %p109 = scmp.ne.s32.totalorder %s94, %s108
      %p110 = scmp.eq.s32.totalorder %s21, 0
      %p111 = por %p109, %p110
      %s113 = sadd.s32 %s112, 1
      %p116 = scmp.eq.s32.totalorder %s15, 1
      %p117 = scmp.ne.s32.totalorder %s112, %s114
      %p118 = scmp.eq.s32.totalorder %s15, 0
      %p119 = por %p117, %p118
      %p120 = scmp.ne.s32.totalorder %s112, %s114
      %p121 = scmp.eq.s32.totalorder %s20, 1
      %p122 = por %p120, %p121
      %p123 = scmp.ne.s32.totalorder %s114, %s115
      %p124 = scmp.eq.s32.totalorder %s20, 0
      %p125 = por %p123, %p124
      %p126 = scmp.ne.s32.totalorder %s114, %s115
      %p127 = scmp.eq.s32.totalorder %s21, 1
      %p128 = por %p126, %p127
      %p130 = scmp.ne.s32.totalorder %s115, %s129
      %p131 = scmp.eq.s32.totalorder %s21, 0
      %p132 = por %p130, %p131
      %s134 = sadd.s32 %s133, 1
      %p137 = scmp.eq.s32.totalorder %s15, 1
      %p138 = scmp.ne.s32.totalorder %s133, %s135
      %p139 = scmp.eq.s32.totalorder %s15, 0
      %p140 = por %p138, %p139
      %p141 = scmp.ne.s32.totalorder %s133, %s135
      %p142 = scmp.eq.s32.totalorder %s20, 1
      %p143 = por %p141, %p142
      %p144 = scmp.ne.s32.totalorder %s135, %s136
      %p145 = scmp.eq.s32.totalorder %s20, 0
      %p146 = por %p144, %p145
      %p147 = scmp.ne.s32.totalorder %s135, %s136
      %p148 = scmp.eq.s32.totalorder %s21, 1
      %p149 = por %p147, %p148
      %p151 = scmp.ne.s32.totalorder %s136, %s150
      %p152 = scmp.eq.s32.totalorder %s21, 0
      %p153 = por %p151, %p152
      %s155 = sadd.s32 %s154, 1
      %p158 = scmp.eq.s32.totalorder %s15, 1
      %p159 = scmp.ne.s32.totalorder %s154, %s156
      %p160 = scmp.eq.s32.totalorder %s15, 0
      %p161 = por %p159, %p160
      %p162 = scmp.ne.s32.totalorder %s154, %s156
      %p163 = scmp.eq.s32.totalorder %s20, 1
      %p164 = por %p162, %p163
      %p165 = scmp.ne.s32.totalorder %s156, %s157
      %p166 = scmp.eq.s32.totalorder %s20, 0
      %p167 = por %p165, %p166
      %p168 = scmp.ne.s32.totalorder %s156, %s157
      %p169 = scmp.eq.s32.totalorder %s21, 1
      %p170 = por %p168, %p169
      %p172 = scmp.ne.s32.totalorder %s157, %s171
      %p173 = scmp.eq.s32.totalorder %s21, 0
      %p174 = por %p172, %p173
      %s175 = ssub.s32 %s22, %s34
      %s176 = ssub.s32 %s23, %s30
      %s177 = sor.u32 %s175, %s176
      %p178 = scmp.eq.s32.totalorder %s177, 0
      %s180 = sadd.s32 %s179, 1
      %s181 = scalar_select %p178, %s179, %s180
      %p184 = pneg %p178
      %p185 = scmp.eq.s32.totalorder %s15, 1
      %p186 = por %p184, %p185
      %p187 = scmp.ne.s32.totalorder %s179, %s182
      %p188 = scmp.eq.s32.totalorder %s15, 0
      %p189 = por %p187, %p188
      %p190 = scmp.ne.s32.totalorder %s179, %s182
      %p191 = scmp.eq.s32.totalorder %s20, 1
      %p192 = por %p190, %p191
      %p193 = scmp.ne.s32.totalorder %s182, %s183
      %p194 = scmp.eq.s32.totalorder %s20, 0
      %p195 = por %p193, %p194
      %p196 = scmp.ne.s32.totalorder %s182, %s183
      %p197 = scmp.eq.s32.totalorder %s21, 1
      %p198 = por %p196, %p197
      %p200 = scmp.ne.s32.totalorder %s183, %s199
      %p201 = scmp.eq.s32.totalorder %s21, 0
      %p202 = por %p200, %p201
      %p203 = scmp.le.s32.totalorder 1, %s15
      %p204 = scmp.lt.s32.totalorder %s15, 3
      %p205 = pnand %p203, %p204
      %p206 = pneg %p205
      // Predicated region
      $region9: #{tpu_custom_call.1} parent=5 // pred_check
        _
      $region10: #{tpu_custom_call.1} parent=5 // pred_check_branch
        %208 = sbr.rel (%p205) target = $region12
      $region11: #{tpu_custom_call.1} parent=5 // pred_region
        %s209 = ssub.s32 %s15, 1
        // Predicated region
        $region13: #{tpu_custom_call.1} parent=11 // pred_check
          %p210 = pneg %p104
        $region14: #{tpu_custom_call.1} parent=11 // pred_check_branch
          %212 = sbr.rel (%p210) target = $region16
        $region15: #{tpu_custom_call.1} parent=11 // pred_region
          _
        $region16: #{tpu_custom_call.1} parent=11 // pred_fallthru
          _
        // Predicated region
        $region17: #{tpu_custom_call.1} parent=11 // pred_check
          %p213 = pneg %p125
        $region18: #{tpu_custom_call.1} parent=11 // pred_check_branch
          %215 = sbr.rel (%p213) target = $region20
        $region19: #{tpu_custom_call.1} parent=11 // pred_region
          _
        $region20: #{tpu_custom_call.1} parent=11 // pred_fallthru
          _
        // Predicated region
        $region21: #{tpu_custom_call.1} parent=11 // pred_check
          %p216 = pneg %p146
        $region22: #{tpu_custom_call.1} parent=11 // pred_check_branch
          %218 = sbr.rel (%p216) target = $region24
        $region23: #{tpu_custom_call.1} parent=11 // pred_region
          _
        $region24: #{tpu_custom_call.1} parent=11 // pred_fallthru
          _
        // Predicated region
        $region25: #{tpu_custom_call.1} parent=11 // pred_check
          %p219 = pneg %p167
        $region26: #{tpu_custom_call.1} parent=11 // pred_check_branch
          %221 = sbr.rel (%p219) target = $region28
        $region27: #{tpu_custom_call.1} parent=11 // pred_region
          _
        $region28: #{tpu_custom_call.1} parent=11 // pred_fallthru
          _
      $region12: #{tpu_custom_call.1} parent=5 // pred_fallthru
        _
      %p222 = scmp.lt.s32.totalorder %s15, 2
      // Predicated region
      $region29: #{tpu_custom_call.1} parent=5 // pred_check
        %p223 = pneg %p222
      $region30: #{tpu_custom_call.1} parent=5 // pred_check_branch
        %225 = sbr.rel (%p223) target = $region32
      $region31: #{tpu_custom_call.1} parent=5 // pred_region
        // Predicated region
        $region33: #{tpu_custom_call.1} parent=31 // pred_check
          %p226 = pneg %p49
        $region34: #{tpu_custom_call.1} parent=31 // pred_check_branch
          %228 = sbr.rel (%p226) target = $region36
        $region35: #{tpu_custom_call.1} parent=31 // pred_region
          %s229 = smul.u32 2, %s23
          %p230 = scmp.lt.s32.totalorder %s22, 1
          %s231 = scalar_select %p230, %s22, 1
          %p232 = scmp.lt.s32.totalorder %s229, 1
          %s233 = scalar_select %p232, %s229, 1
          %s234 = smul.addr %s231, 2
          %s235 = sadd.s32 %s233, %s234
          %s236 = smul.addr %s235, 4
          %s237 = scalar_lea.vmem %s0, %s236
          %s238 = smul.u32 2, %s23
        $region36: #{tpu_custom_call.1} parent=31 // pred_fallthru
          _
        // Predicated region
        $region37: #{tpu_custom_call.1} parent=31 // pred_check
          %p239 = pneg %p77
        $region38: #{tpu_custom_call.1} parent=31 // pred_check_branch
          %241 = sbr.rel (%p239) target = $region40
        $region39: #{tpu_custom_call.1} parent=31 // pred_region
          %p242 = scmp.lt.s32.totalorder %s22, 1
          %s243 = scalar_select %p242, %s22, 1
          %p244 = scmp.lt.s32.totalorder %s23, 0
          %s245 = scalar_select %p244, %s23, 0
          %s246 = sadd.s32 %s245, %s243
          %s247 = smul.addr %s246, 4
          %s248 = scalar_lea.vmem %s1, %s247
        $region40: #{tpu_custom_call.1} parent=31 // pred_fallthru
          _
      $region32: #{tpu_custom_call.1} parent=5 // pred_fallthru
        _
      %p249 = scmp.le.s32.totalorder 1, %s15
      %p250 = scmp.lt.s32.totalorder %s15, 3
      %p251 = pnand %p249, %p250
      %p252 = pneg %p251
      // Predicated region
      $region41: #{tpu_custom_call.1} parent=5 // pred_check
        _
      $region42: #{tpu_custom_call.1} parent=5 // pred_check_branch
        %254 = sbr.rel (%p251) target = $region44
      $region43: #{tpu_custom_call.1} parent=5 // pred_region
        %s255 = ssub.s32 %s15, 1
        %s256 = smul.u32 2, %s25
        %p257 = scmp.lt.s32.totalorder %s24, 1
        %s258 = scalar_select %p257, %s24, 1
        %p259 = scmp.lt.s32.totalorder %s256, 1
        %s260 = scalar_select %p259, %s256, 1
        %s261 = smul.addr %s258, 2
        %s262 = sadd.s32 %s260, %s261
        %s263 = smul.addr %s262, 4
        %s264 = scalar_lea.vmem %s0, %s263
        %p265 = pneg %p55
        %p266 = pneg %p52
        %p267 = scmp.lt.s32.totalorder %s24, 1
        %s268 = scalar_select %p267, %s24, 1
        %p269 = scmp.lt.s32.totalorder %s25, 0
        %s270 = scalar_select %p269, %s25, 0
        %s271 = sadd.s32 %s270, %s268
        %s272 = smul.addr %s271, 4
        %s273 = scalar_lea.vmem %s1, %s272
        %p274 = pneg %p83
        %p275 = pneg %p80
        %p276 = pneg %p104
        %p277 = pneg %p101
        %p278 = pneg %p125
        %p279 = pneg %p122
        %p280 = pneg %p146
        %p281 = pneg %p143
        %p282 = pneg %p167
        %p283 = pneg %p164
        %p284 = pneg %p195
        %p285 = pneg %p192
        %s286 = sand.u32 %s182, 1
        %s287 = scalar_lea.sflag [#allocation5], %s286
        %s288 = sand.u32 %s182, 1
        %s289 = smul.addr %s288, 2
        %s290 = scalar_lea.vmem [#allocation4], %s289
        %s291 = smul.u32 2, %s25
        %p292 = scmp.lt.s32.totalorder %s24, 1
        %s293 = scalar_select %p292, %s24, 1
        %p294 = scmp.lt.s32.totalorder %s291, 1
        %s295 = scalar_select %p294, %s291, 1
        %s296 = smul.addr %s293, 2
        %s297 = sadd.s32 %s295, %s296
        %s298 = smul.addr %s297, 4
        %s299 = scalar_lea.vmem %s0, %s298
        %s300 = smul.u32 2, %s25
        %p301 = scmp.lt.s32.totalorder %s24, 1
        %s302 = scalar_select %p301, %s24, 1
        %p303 = scmp.lt.s32.totalorder %s25, 0
        %s304 = scalar_select %p303, %s25, 0
        %s305 = sadd.s32 %s304, %s302
        %s306 = smul.addr %s305, 4
        %s307 = scalar_lea.vmem %s1, %s306
        %v308 = vld [vmem:[%s3] sm:$0x3]
        %v309 = vld [vmem:[%s307] sm:$0xf]
        %v310 = vld [vmem:[%s5] sm:$0x3]
        %312 = vset.pattern.permute.xlu0 0
        %313 = vperm.xlu0 %312, %v310
        %v314 = vpop.permute.xlu0 %313
        %vm316 = vcmask 31744
        %v318 = vsel %vm316, %v308, 0
        %vm320 = vcmask 1043456
        %v322 = vsel %vm320, %v309, 0
        %324 = vmatprep.subr.mxu0 0.0
        %325 = vmatpush1.msra.mxu0 %v322
        %326 = vmatprep.subr.mxu0 0.0
        %327 = vmatpush1.msra.mxu0 0.0
        %328 = vmatprep.subr.mxu0 0.0
        %329 = vmatpush1.msra.mxu0 0.0
        %330 = vmatprep.subr.mxu0 0.0
        %331 = vmatpush1.msra.mxu0 0.0
        %332 = vmatprep.subr.mxu0 0.0
        %333 = vmatpush1.msra.mxu0 0.0
        %334 = vmatprep.subr.mxu0 0.0
        %335 = vmatpush1.msra.mxu0 0.0
        %336 = vmatprep.subr.mxu0 0.0
        %337 = vmatpush1.msra.mxu0 0.0
        %338 = vmatprep.subr.mxu0 0.0
        %339 = vmatpush1.msra.mxu0 0.0
        %340 = vmatprep.subr.mxu0 0.0
        %341 = vmatpush1.msra.mxu0 0.0
        %342 = vmatprep.subr.mxu0 0.0
        %343 = vmatpush1.msra.mxu0 0.0
        %344 = vmatprep.subr.mxu0 0.0
        %345 = vmatpush1.msra.mxu0 0.0
        %346 = vmatprep.subr.mxu0 0.0
        %347 = vmatpush1.msra.mxu0 0.0
        %348 = vmatprep.subr.mxu0 0.0
        %349 = vmatpush1.msra.mxu0 0.0
        %350 = vmatprep.subr.mxu0 0.0
        %351 = vmatpush1.msra.mxu0 0.0
        %352 = vmatprep.subr.mxu0 0.0
        %353 = vmatpush1.msra.mxu0 0.0
        %354 = vmatprep.subr.mxu0 0.0
        %355 = vmatpush1.msra.mxu0 0.0
        %356 = vmatprep.subr.mxu0 0.0
        %357 = vmatpush1.msra.mxu0 0.0
        %358 = vmatprep.subr.mxu0 0.0
        %359 = vmatpush1.msra.mxu0 0.0
        %360 = vmatprep.subr.mxu0 0.0
        %361 = vmatpush1.msra.mxu0 0.0
        %362 = vmatprep.subr.mxu0 0.0
        %363 = vmatpush1.msra.mxu0 0.0
        %364 = vmatprep.subr.mxu0 0.0
        %365 = vmatpush1.msra.mxu0 0.0
        %366 = vmatprep.subr.mxu0 0.0
        %367 = vmatpush1.msra.mxu0 0.0
        %368 = vmatprep.subr.mxu0 0.0
        %369 = vmatpush1.msra.mxu0 0.0
        %370 = vmatprep.subr.mxu0 0.0
        %371 = vmatpush1.msra.mxu0 0.0
        %372 = vmatprep.subr.mxu0 0.0
        %373 = vmatpush1.msra.mxu0 0.0
        %374 = vmatprep.subr.mxu0 0.0
        %375 = vmatpush1.msra.mxu0 0.0
        %376 = vmatprep.subr.mxu0 0.0
        %377 = vmatpush1.msra.mxu0 0.0
        %378 = vmatprep.subr.mxu0 0.0
        %379 = vmatpush1.msra.mxu0 0.0
        %380 = vmatprep.subr.mxu0 0.0
        %381 = vmatpush1.msra.mxu0 0.0
        %382 = vmatprep.subr.mxu0 0.0
        %383 = vmatpush1.msra.mxu0 0.0
        %384 = vmatprep.subr.mxu0 0.0
        %385 = vmatpush1.msra.mxu0 0.0
        %386 = vmatprep.subr.mxu0 0.0
        %387 = vmatpush1.msra.mxu0 0.0
        %388 = vmatprep.mubr.f32.mxu0 0.0
        %389 = vmatmul.mubr.f32.gmra.mrb[0].mxu0 %v318
        %v390 = vpop.f32.mrb[0].mxu0
        %v391 = vadd.f32 %v314, %v390
        %v392 = vpop.f32.mrb[0].mxu0
        %393 = vdwg.mxu0
        %vm394 = vcmask 517120
        %395 = vst.msk [vmem:[%s290] sm:$0x3] %vm394, %v391
        %v396 = vld [vmem:[%s2] sm:$0x3]
        %v397 = vld [vmem:[%s299] sm:$0xff]
        %v399 = vcombine.high %v397, %v397
        %v401 = vsel %vm316, %v396, 0
        %v403 = vsel %vm320, %v397, 0
        %v405 = vsel %vm320, %v399, 0
        %407 = vmatprep.subr.mxu0 %v405
        %408 = vmatpush1.msra.mxu0 %v403
        %409 = vmatprep.subr.mxu0 0.0
        %410 = vmatpush1.msra.mxu0 0.0
        %411 = vmatprep.subr.mxu0 0.0
        %412 = vmatpush1.msra.mxu0 0.0
        %413 = vmatprep.subr.mxu0 0.0
        %414 = vmatpush1.msra.mxu0 0.0
        %415 = vmatprep.subr.mxu0 0.0
        %416 = vmatpush1.msra.mxu0 0.0
        %417 = vmatprep.subr.mxu0 0.0
        %418 = vmatpush1.msra.mxu0 0.0
        %419 = vmatprep.subr.mxu0 0.0
        %420 = vmatpush1.msra.mxu0 0.0
        %421 = vmatprep.subr.mxu0 0.0
        %422 = vmatpush1.msra.mxu0 0.0
        %423 = vmatprep.subr.mxu0 0.0
        %424 = vmatpush1.msra.mxu0 0.0
        %425 = vmatprep.subr.mxu0 0.0
        %426 = vmatpush1.msra.mxu0 0.0
        %427 = vmatprep.subr.mxu0 0.0
        %428 = vmatpush1.msra.mxu0 0.0
        %429 = vmatprep.subr.mxu0 0.0
        %430 = vmatpush1.msra.mxu0 0.0
        %431 = vmatprep.subr.mxu0 0.0
        %432 = vmatpush1.msra.mxu0 0.0
        %433 = vmatprep.subr.mxu0 0.0
        %434 = vmatpush1.msra.mxu0 0.0
        %435 = vmatprep.subr.mxu0 0.0
        %436 = vmatpush1.msra.mxu0 0.0
        %437 = vmatprep.subr.mxu0 0.0
        %438 = vmatpush1.msra.mxu0 0.0
        %439 = vmatprep.subr.mxu0 0.0
        %440 = vmatpush1.msra.mxu0 0.0
        %441 = vmatprep.subr.mxu0 0.0
        %442 = vmatpush1.msra.mxu0 0.0
        %443 = vmatprep.subr.mxu0 0.0
        %444 = vmatpush1.msra.mxu0 0.0
        %445 = vmatprep.subr.mxu0 0.0
        %446 = vmatpush1.msra.mxu0 0.0
        %447 = vmatprep.subr.mxu0 0.0
        %448 = vmatpush1.msra.mxu0 0.0
        %449 = vmatprep.subr.mxu0 0.0
        %450 = vmatpush1.msra.mxu0 0.0
        %451 = vmatprep.subr.mxu0 0.0
        %452 = vmatpush1.msra.mxu0 0.0
        %453 = vmatprep.subr.mxu0 0.0
        %454 = vmatpush1.msra.mxu0 0.0
        %455 = vmatprep.subr.mxu0 0.0
        %456 = vmatpush1.msra.mxu0 0.0
        %457 = vmatprep.subr.mxu0 0.0
        %458 = vmatpush1.msra.mxu0 0.0
        %459 = vmatprep.subr.mxu0 0.0
        %460 = vmatpush1.msra.mxu0 0.0
        %461 = vmatprep.subr.mxu0 0.0
        %462 = vmatpush1.msra.mxu0 0.0
        %463 = vmatprep.subr.mxu0 0.0
        %464 = vmatpush1.msra.mxu0 0.0
        %465 = vmatprep.subr.mxu0 0.0
        %466 = vmatpush1.msra.mxu0 0.0
        %467 = vmatprep.subr.mxu0 0.0
        %468 = vmatpush1.msra.mxu0 0.0
        %469 = vmatprep.subr.mxu0 0.0
        %470 = vmatpush1.msra.mxu0 0.0
        %471 = vmatprep.mubr.f32.mxu0 0.0
        %472 = vmatmul.mubr.f32.gmra.mrb[0].mxu0 %v401
        %v473 = vpop.f32.mrb[0].mxu0
        %v474 = vadd.f32 0.0, %v473
        %v475 = vpop.f32.mrb[0].mxu0
        %v476 = vadd.f32 0.0, %v475
        %477 = vdwg.mxu0
        %v480 = vcombine.low %v474, %v476
        %v482 = vunpack.c.l.s4 1983009808
        %v483 = vunpack.c.0.s8 %v482
        %v484 = vlaneseq
        %v485 = vshrl.u32 %v484, 7
        %v486 = vsub.s32 %v483, %v485
        %v487 = vrot.slane %v480, %v486
        %489 = vst [vmem:[#allocation2] sm:$0xf] %v487
        %v490 = vld [vmem:[#allocation2] sm:$0x1]
        %492 = vrot.lane.b32.xlu0 %v490, 112
        %v493 = vpop.permute.xlu0 %492
        %v495 = vadd.f32 %v490, %v493
        %vm496 = vcmask 122880
        %497 = vst.msk [vmem:[#allocation3] sm:$0x1] %vm496, %v495
        %v498 = vld [vmem:[#allocation2] sm:$0x1]
        %500 = vrot.lane.b32.xlu0 %v498, 112
        %v501 = vpop.permute.xlu0 %500
        %v503 = vadd.f32 %v498, %v501
        %v505 = vlaneseq
        %v506 = vshrl.u32 %v505, 7
        %v507 = vsub.s32 0, %v506
        %v508 = vrot.slane %v503, %v507
        %509 = vrot.lane.b32.xlu0 %v508, 96
        %v510 = vpop.permute.xlu0 %509
        %512 = vst.msk [vmem:[#allocation3 + $0x1] sm:$0x1] %vm496, %v510
        %v513 = vld [vmem:[#allocation2] sm:$0x1]
        %515 = vrot.lane.b32.xlu0 %v513, 112
        %v516 = vpop.permute.xlu0 %515
        %v518 = vadd.f32 %v513, %v516
        %v520 = vlaneseq
        %v521 = vshrl.u32 %v520, 7
        %v522 = vsub.s32 0, %v521
        %v523 = vrot.slane %v518, %v522
        %524 = vrot.lane.b32.xlu0 %v523, 64
        %v525 = vpop.permute.xlu0 %524
        %527 = vst.msk [vmem:[#allocation3 + $0x2] sm:$0x1] %vm496, %v525
        %v528 = vld [vmem:[#allocation2] sm:$0x1]
        %530 = vrot.lane.b32.xlu0 %v528, 112
        %v531 = vpop.permute.xlu0 %530
        %v533 = vadd.f32 %v528, %v531
        %v535 = vlaneseq
        %v536 = vshrl.u32 %v535, 7
        %v537 = vsub.s32 0, %v536
        %v538 = vrot.slane %v533, %v537
        %539 = vrot.lane.b32.xlu0 %v538, 32
        %v540 = vpop.permute.xlu0 %539
        %542 = vst.msk [vmem:[#allocation3 + $0x3] sm:$0x1] %vm496, %v540
        %v543 = vld [vmem:[#allocation2 + $0x2] sm:$0x1]
        %545 = vrot.lane.b32.xlu0 %v543, 112
        %v546 = vpop.permute.xlu0 %545
        %v548 = vadd.f32 %v543, %v546
        %549 = vst.msk [vmem:[#allocation3 + $0x4] sm:$0x1] %vm496, %v548
        %v550 = vld [vmem:[#allocation2 + $0x2] sm:$0x1]
        %552 = vrot.lane.b32.xlu0 %v550, 112
        %v553 = vpop.permute.xlu0 %552
        %v555 = vadd.f32 %v550, %v553
        %v557 = vlaneseq
        %v558 = vshrl.u32 %v557, 7
        %v559 = vsub.s32 0, %v558
        %v560 = vrot.slane %v555, %v559
        %561 = vrot.lane.b32.xlu0 %v560, 96
        %v562 = vpop.permute.xlu0 %561
        %564 = vst.msk [vmem:[#allocation3 + $0x5] sm:$0x1] %vm496, %v562
        %v565 = vld [vmem:[#allocation2 + $0x2] sm:$0x1]
        %567 = vrot.lane.b32.xlu0 %v565, 112
        %v568 = vpop.permute.xlu0 %567
        %v570 = vadd.f32 %v565, %v568
        %v572 = vlaneseq
        %v573 = vshrl.u32 %v572, 7
        %v574 = vsub.s32 0, %v573
        %v575 = vrot.slane %v570, %v574
        %576 = vrot.lane.b32.xlu0 %v575, 64
        %v577 = vpop.permute.xlu0 %576
        %579 = vst.msk [vmem:[#allocation3 + $0x6] sm:$0x1] %vm496, %v577
        %v580 = vld [vmem:[#allocation2 + $0x2] sm:$0x1]
        %582 = vrot.lane.b32.xlu0 %v580, 112
        %v583 = vpop.permute.xlu0 %582
        %v585 = vadd.f32 %v580, %v583
        %v587 = vlaneseq
        %v588 = vshrl.u32 %v587, 7
        %v589 = vsub.s32 0, %v588
        %v590 = vrot.slane %v585, %v589
        %591 = vrot.lane.b32.xlu0 %v590, 32
        %v592 = vpop.permute.xlu0 %591
        %594 = vst.msk [vmem:[#allocation3 + $0x7] sm:$0x1] %vm496, %v592
        %v595 = vld [vmem:[#allocation2 + $0x1] sm:$0x1]
        %597 = vrot.lane.b32.xlu0 %v595, 112
        %v598 = vpop.permute.xlu0 %597
        %v600 = vadd.f32 %v595, %v598
        %601 = vst.msk [vmem:[#allocation3 + $0x8] sm:$0x1] %vm496, %v600
        %v602 = vld [vmem:[#allocation2 + $0x1] sm:$0x1]
        %604 = vrot.lane.b32.xlu0 %v602, 112
        %v605 = vpop.permute.xlu0 %604
        %v607 = vadd.f32 %v602, %v605
        %v609 = vlaneseq
        %v610 = vshrl.u32 %v609, 7
        %v611 = vsub.s32 0, %v610
        %v612 = vrot.slane %v607, %v611
        %613 = vrot.lane.b32.xlu0 %v612, 96
        %v614 = vpop.permute.xlu0 %613
        %616 = vst.msk [vmem:[#allocation3 + $0x9] sm:$0x1] %vm496, %v614
        %v617 = vld [vmem:[#allocation2 + $0x1] sm:$0x1]
        %619 = vrot.lane.b32.xlu0 %v617, 112
        %v620 = vpop.permute.xlu0 %619
        %v622 = vadd.f32 %v617, %v620
        %v624 = vlaneseq
        %v625 = vshrl.u32 %v624, 7
        %v626 = vsub.s32 0, %v625
        %v627 = vrot.slane %v622, %v626
        %628 = vrot.lane.b32.xlu0 %v627, 64
        %v629 = vpop.permute.xlu0 %628
        %631 = vst.msk [vmem:[#allocation3 + $0xa] sm:$0x1] %vm496, %v629
        %v632 = vld [vmem:[#allocation2 + $0x1] sm:$0x1]
        %634 = vrot.lane.b32.xlu0 %v632, 112
        %v635 = vpop.permute.xlu0 %634
        %v637 = vadd.f32 %v632, %v635
        %v639 = vlaneseq
        %v640 = vshrl.u32 %v639, 7
        %v641 = vsub.s32 0, %v640
        %v642 = vrot.slane %v637, %v641
        %643 = vrot.lane.b32.xlu0 %v642, 32
        %v644 = vpop.permute.xlu0 %643
        %646 = vst.msk [vmem:[#allocation3 + $0xb] sm:$0x1] %vm496, %v644
        %v647 = vld [vmem:[#allocation2 + $0x3] sm:$0x1]
        %649 = vrot.lane.b32.xlu0 %v647, 112
        %v650 = vpop.permute.xlu0 %649
        %v652 = vadd.f32 %v647, %v650
        %653 = vst.msk [vmem:[#allocation3 + $0xc] sm:$0x1] %vm496, %v652
        %v654 = vld [vmem:[#allocation2 + $0x3] sm:$0x1]
        %656 = vrot.lane.b32.xlu0 %v654, 112
        %v657 = vpop.permute.xlu0 %656
        %v659 = vadd.f32 %v654, %v657
        %v661 = vlaneseq
        %v662 = vshrl.u32 %v661, 7
        %v663 = vsub.s32 0, %v662
        %v664 = vrot.slane %v659, %v663
        %665 = vrot.lane.b32.xlu0 %v664, 96
        %v666 = vpop.permute.xlu0 %665
        %668 = vst.msk [vmem:[#allocation3 + $0xd] sm:$0x1] %vm496, %v666
        %v669 = vld [vmem:[#allocation2 + $0x3] sm:$0x1]
        %671 = vrot.lane.b32.xlu0 %v669, 112
        %v672 = vpop.permute.xlu0 %671
        %v674 = vadd.f32 %v669, %v672
        %v676 = vlaneseq
        %v677 = vshrl.u32 %v676, 7
        %v678 = vsub.s32 0, %v677
        %v679 = vrot.slane %v674, %v678
        %680 = vrot.lane.b32.xlu0 %v679, 64
        %v681 = vpop.permute.xlu0 %680
        %683 = vst.msk [vmem:[#allocation3 + $0xe] sm:$0x1] %vm496, %v681
        %v684 = vld [vmem:[#allocation2 + $0x3] sm:$0x1]
        %686 = vrot.lane.b32.xlu0 %v684, 112
        %v687 = vpop.permute.xlu0 %686
        %v689 = vadd.f32 %v684, %v687
        %v691 = vlaneseq
        %v692 = vshrl.u32 %v691, 7
        %v693 = vsub.s32 0, %v692
        %v694 = vrot.slane %v689, %v693
        %695 = vrot.lane.b32.xlu0 %v694, 32
        %v696 = vpop.permute.xlu0 %695
        %698 = vst.msk [vmem:[#allocation3 + $0xf] sm:$0x1] %vm496, %v696
        %v699 = vld [vmem:[#allocation3] sm:$0xff]
        %v700 = vld [vmem:[#allocation3 + $0x8] sm:$0xff]
        %v701 = vld [vmem:[%s4] sm:$0xff]
        %v702 = vld [vmem:[%s4 + $0x8] sm:$0xff]
        %vm703 = vcmask 130048
        %v705 = vsel %vm703, %v699, 0
        %v708 = vsel %vm703, %v700, 0
        %710 = vmatprep.subr.mxu0 0.0
        %711 = vmatpush1.msra.mxu0 %v701
        %712 = vmatprep.subr.mxu0 0.0
        %713 = vmatpush1.msra.mxu0 %v702
        %714 = vmatprep.subr.mxu0 0.0
        %715 = vmatpush1.msra.mxu0 0.0
        %716 = vmatprep.subr.mxu0 0.0
        %717 = vmatpush1.msra.mxu0 0.0
        %718 = vmatprep.subr.mxu0 0.0
        %719 = vmatpush1.msra.mxu0 0.0
        %720 = vmatprep.subr.mxu0 0.0
        %721 = vmatpush1.msra.mxu0 0.0
        %722 = vmatprep.subr.mxu0 0.0
        %723 = vmatpush1.msra.mxu0 0.0
        %724 = vmatprep.subr.mxu0 0.0
        %725 = vmatpush1.msra.mxu0 0.0
        %726 = vmatprep.subr.mxu0 0.0
        %727 = vmatpush1.msra.mxu0 0.0
        %728 = vmatprep.subr.mxu0 0.0
        %729 = vmatpush1.msra.mxu0 0.0
        %730 = vmatprep.subr.mxu0 0.0
        %731 = vmatpush1.msra.mxu0 0.0
        %732 = vmatprep.subr.mxu0 0.0
        %733 = vmatpush1.msra.mxu0 0.0
        %734 = vmatprep.subr.mxu0 0.0
        %735 = vmatpush1.msra.mxu0 0.0
        %736 = vmatprep.subr.mxu0 0.0
        %737 = vmatpush1.msra.mxu0 0.0
        %738 = vmatprep.subr.mxu0 0.0
        %739 = vmatpush1.msra.mxu0 0.0
        %740 = vmatprep.subr.mxu0 0.0
        %741 = vmatpush1.msra.mxu0 0.0
        %742 = vmatprep.subr.mxu0 0.0
        %743 = vmatpush1.msra.mxu0 0.0
        %744 = vmatprep.subr.mxu0 0.0
        %745 = vmatpush1.msra.mxu0 0.0
        %746 = vmatprep.subr.mxu0 0.0
        %747 = vmatpush1.msra.mxu0 0.0
        %748 = vmatprep.subr.mxu0 0.0
        %749 = vmatpush1.msra.mxu0 0.0
        %750 = vmatprep.subr.mxu0 0.0
        %751 = vmatpush1.msra.mxu0 0.0
        %752 = vmatprep.subr.mxu0 0.0
        %753 = vmatpush1.msra.mxu0 0.0
        %754 = vmatprep.subr.mxu0 0.0
        %755 = vmatpush1.msra.mxu0 0.0
        %756 = vmatprep.subr.mxu0 0.0
        %757 = vmatpush1.msra.mxu0 0.0
        %758 = vmatprep.subr.mxu0 0.0
        %759 = vmatpush1.msra.mxu0 0.0
        %760 = vmatprep.subr.mxu0 0.0
        %761 = vmatpush1.msra.mxu0 0.0
        %762 = vmatprep.subr.mxu0 0.0
        %763 = vmatpush1.msra.mxu0 0.0
        %764 = vmatprep.subr.mxu0 0.0
        %765 = vmatpush1.msra.mxu0 0.0
        %766 = vmatprep.subr.mxu0 0.0
        %767 = vmatpush1.msra.mxu0 0.0
        %768 = vmatprep.subr.mxu0 0.0
        %769 = vmatpush1.msra.mxu0 0.0
        %770 = vmatprep.subr.mxu0 0.0
        %771 = vmatpush1.msra.mxu0 0.0
        %772 = vmatprep.subr.mxu0 0.0
        %773 = vmatpush1.msra.mxu0 0.0
        %774 = vmatprep.mubr.f32.mxu0 0.0
        %775 = vmatmul.mubr.f32.gmra.mrb[0].mxu0 %v705
        %v776 = vpop.f32.mrb[0].mxu0
        %v777 = vadd.f32 0.0, %v776
        %v778 = vpop.f32.mrb[0].mxu0
        %779 = vmatprep.mubr.f32.mxu0 0.0
        %780 = vmatmul.mubr.f32.gmra.mrb[0].mxu0 %v708
        %v781 = vpop.f32.mrb[0].mxu0
        %v782 = vadd.f32 0.0, %v781
        %v783 = vpop.f32.mrb[0].mxu0
        %784 = vdwg.mxu0
        %v785 = vld [vmem:[%s290] sm:$0x1]
        %v786 = vadd.f32 %v785, %v777
        %vm787 = vcmask 57344
        %788 = vst.msk [vmem:[%s290] sm:$0x1] %vm787, %v786
        %v789 = vld [vmem:[%s290] sm:$0x1]
        %v791 = vrot.slane %v777, 1
        %792 = vrot.lane.b32.xlu0 %v791, 8
        %v793 = vpop.permute.xlu0 %792
        %v795 = vadd.f32 %v789, %v793
        %vm796 = vcmask 122944
        %797 = vst.msk [vmem:[%s290] sm:$0x1] %vm796, %v795
        %v798 = vld [vmem:[%s290] sm:$0x1]
        %v799 = vrot.slane %v777, 2
        %800 = vrot.lane.b32.xlu0 %v799, 16
        %v801 = vpop.permute.xlu0 %800
        %v803 = vadd.f32 %v798, %v801
        %vm804 = vcmask 188544
        %805 = vst.msk [vmem:[%s290] sm:$0x1] %vm804, %v803
        %v806 = vld [vmem:[%s290] sm:$0x1]
        %v807 = vrot.slane %v777, 3
        %808 = vrot.lane.b32.xlu0 %v807, 24
        %v809 = vpop.permute.xlu0 %808
        %v811 = vadd.f32 %v806, %v809
        %vm812 = vcmask 254144
        %813 = vst.msk [vmem:[%s290] sm:$0x1] %vm812, %v811
        %v814 = vld [vmem:[%s290] sm:$0x1]
        %v815 = vrot.slane %v777, 4
        %816 = vrot.lane.b32.xlu0 %v815, 32
        %v817 = vpop.permute.xlu0 %816
        %v819 = vadd.f32 %v814, %v817
        %vm820 = vcmask 319744
        %821 = vst.msk [vmem:[%s290] sm:$0x1] %vm820, %v819
        %v822 = vld [vmem:[%s290] sm:$0x1]
        %v823 = vrot.slane %v777, 5
        %824 = vrot.lane.b32.xlu0 %v823, 40
        %v825 = vpop.permute.xlu0 %824
        %v827 = vadd.f32 %v822, %v825
        %vm828 = vcmask 385344
        %829 = vst.msk [vmem:[%s290] sm:$0x1] %vm828, %v827
        %v830 = vld [vmem:[%s290] sm:$0x1]
        %v831 = vrot.slane %v777, 6
        %832 = vrot.lane.b32.xlu0 %v831, 48
        %v833 = vpop.permute.xlu0 %832
        %v835 = vadd.f32 %v830, %v833
        %vm836 = vcmask 450944
        %837 = vst.msk [vmem:[%s290] sm:$0x1] %vm836, %v835
        %v838 = vld [vmem:[%s290] sm:$0x1]
        %v839 = vrot.slane %v777, 7
        %840 = vrot.lane.b32.xlu0 %v839, 56
        %v841 = vpop.permute.xlu0 %840
        %v843 = vadd.f32 %v838, %v841
        %vm844 = vcmask 516544
        %845 = vst.msk [vmem:[%s290] sm:$0x1] %vm844, %v843
        %v846 = vld [vmem:[%s290 + $0x1] sm:$0x1]
        %v847 = vadd.f32 %v846, %v782
        %848 = vst.msk [vmem:[%s290 + $0x1] sm:$0x1] %vm787, %v847
        %v849 = vld [vmem:[%s290 + $0x1] sm:$0x1]
        %v851 = vrot.slane %v782, 1
        %852 = vrot.lane.b32.xlu0 %v851, 8
        %v853 = vpop.permute.xlu0 %852
        %v855 = vadd.f32 %v849, %v853
        %856 = vst.msk [vmem:[%s290 + $0x1] sm:$0x1] %vm796, %v855
        %v857 = vld [vmem:[%s290 + $0x1] sm:$0x1]
        %v858 = vrot.slane %v782, 2
        %859 = vrot.lane.b32.xlu0 %v858, 16
        %v860 = vpop.permute.xlu0 %859
        %v862 = vadd.f32 %v857, %v860
        %863 = vst.msk [vmem:[%s290 + $0x1] sm:$0x1] %vm804, %v862
        %v864 = vld [vmem:[%s290 + $0x1] sm:$0x1]
        %v865 = vrot.slane %v782, 3
        %866 = vrot.lane.b32.xlu0 %v865, 24
        %v867 = vpop.permute.xlu0 %866
        %v869 = vadd.f32 %v864, %v867
        %870 = vst.msk [vmem:[%s290 + $0x1] sm:$0x1] %vm812, %v869
        %v871 = vld [vmem:[%s290 + $0x1] sm:$0x1]
        %v872 = vrot.slane %v782, 4
        %873 = vrot.lane.b32.xlu0 %v872, 32
        %v874 = vpop.permute.xlu0 %873
        %v876 = vadd.f32 %v871, %v874
        %877 = vst.msk [vmem:[%s290 + $0x1] sm:$0x1] %vm820, %v876
        %v878 = vld [vmem:[%s290 + $0x1] sm:$0x1]
        %v879 = vrot.slane %v782, 5
        %880 = vrot.lane.b32.xlu0 %v879, 40
        %v881 = vpop.permute.xlu0 %880
        %v883 = vadd.f32 %v878, %v881
        %884 = vst.msk [vmem:[%s290 + $0x1] sm:$0x1] %vm828, %v883
        %v885 = vld [vmem:[%s290 + $0x1] sm:$0x1]
        %v886 = vrot.slane %v782, 6
        %887 = vrot.lane.b32.xlu0 %v886, 48
        %v888 = vpop.permute.xlu0 %887
        %v890 = vadd.f32 %v885, %v888
        %891 = vst.msk [vmem:[%s290 + $0x1] sm:$0x1] %vm836, %v890
        %v892 = vld [vmem:[%s290 + $0x1] sm:$0x1]
        %v893 = vrot.slane %v782, 7
        %894 = vrot.lane.b32.xlu0 %v893, 56
        %v895 = vpop.permute.xlu0 %894
        %v897 = vadd.f32 %v892, %v895
        %898 = vst.msk [vmem:[%s290 + $0x1] sm:$0x1] %vm844, %v897
        %s899 = sand.u32 %s182, 1
        %s900 = scalar_lea.sflag [#allocation5], %s899
        %s901 = sand.u32 %s182, 1
        %s902 = smul.addr %s901, 2
        %s903 = scalar_lea.vmem [#allocation4], %s902
        // Predicated region
        $region45: #{tpu_custom_call.1} parent=43 // pred_check
          %p904 = pneg %p192
        $region46: #{tpu_custom_call.1} parent=43 // pred_check_branch
          %906 = sbr.rel (%p904) target = $region48
        $region47: #{tpu_custom_call.1} parent=43 // pred_region
          %s908 = ssub.s32 32, 32
          %909 = vsyncadd %s900, %s908
          %s910 = sadd.s32 %s25, %s24
          %s911 = smul.addr %s910, 32
          %s912 = scalar_lea.hbm %s6, %s911
          %s914 = sshll.u32 %s903, 4
          %s915 = int_to_ptr.vmem [resolvable:$true] %s914
          %917 = dma.vmem_to_hbm [thread:$0]  %s915, 32, %s912, %s900
        $region48: #{tpu_custom_call.1} parent=43 // pred_fallthru
          _
      $region44: #{tpu_custom_call.1} parent=5 // pred_fallthru
        _
      %p918 = scmp.le.s32.totalorder 2, %s15
      // Predicated region
      $region49: #{tpu_custom_call.1} parent=5 // pred_check
        %p919 = pneg %p918
      $region50: #{tpu_custom_call.1} parent=5 // pred_check_branch
        %921 = sbr.rel (%p919) target = $region52
      $region51: #{tpu_custom_call.1} parent=5 // pred_region
        %s922 = ssub.s32 %s15, 2
        // Predicated region
        $region53: #{tpu_custom_call.1} parent=51 // pred_check
          %p923 = pneg %p198
        $region54: #{tpu_custom_call.1} parent=51 // pred_check_branch
          %925 = sbr.rel (%p923) target = $region56
        $region55: #{tpu_custom_call.1} parent=51 // pred_region
          %s926 = sand.u32 %s183, 1
          %s927 = scalar_lea.sflag [#allocation5], %s926
          %s928 = sand.u32 %s183, 1
          %s929 = smul.addr %s928, 2
          %s930 = scalar_lea.vmem [#allocation4], %s929
          %931 = dma.done %s927, 32
        $region56: #{tpu_custom_call.1} parent=51 // pred_fallthru
          _
      $region52: #{tpu_custom_call.1} parent=5 // pred_fallthru
        _
    $region6: #{tpu_custom_call.1} parent=1 // loop_footer
      %s19 = sadd.s32 1, %s15
    $region7: #{tpu_custom_call.1} parent=1 // loop_footer_branch
      %14 = sbr.rel target = $region3
    $region8: #{tpu_custom_call.1} parent=1 // loop_exit
      _
    %932 = vsyncpa [#allocation5], 1
    %s933 = scalar_lea.sflag [#allocation5], 1
    %934 = vsyncpa %s933, 1

</llo_original>
